<compile_context>
chip_gen: v7x
topology: tpu7x:2x2x1
jax: 0.10.0
libtpu: 0.0.40
codegen_flags: <defaults>
</compile_context>

<pallas_src>
import functools

import jax
import jax.numpy as jnp
from jax.experimental import pallas as pl
from jax.experimental.pallas import tpu as pltpu

_LANE = 128
_MiB = 1024 * 1024


def _round_up(v, m):
    return ((v + m - 1) // m) * m


def _round_down(v, m):
    return (v // m) * m


def _vmem_capacity_bytes():
    """Physical per-core VMEM bytes; conservative default if unavailable."""
    try:
        cap = getattr(pltpu.get_tpu_info(), "vmem_capacity_bytes", None)
        if cap:
            return int(cap)
    except Exception:
        pass
    return 64 * _MiB  # v7x per-TensorCore VMEM (smallest of v5e/v6e/v7x)


def _tile_plan(batch, num_features, itemsize, lane_dense_out):
    """Pick (batch_tile, vmem_limit_bytes): byte-sized and generation-aware."""
    vmem_cap = _vmem_capacity_bytes()
    # ~48 MiB scoped VMEM on 64 MiB parts (v7x), ~108 MiB on 128 MiB parts
    # (v5e / v6e).
    vmem_limit = max(32 * _MiB, min(vmem_cap - 16 * _MiB, int(0.85 * vmem_cap)))

    f_pad = _round_up(num_features, _LANE)      # x lane padding in VMEM
    row_align = 16 if itemsize < 4 else 8       # bf16 packs 16 rows per vreg

    # tiny batches: one block covering the whole batch dim
    if batch < 2 * row_align:
        return batch, vmem_limit

    # Per-row VMEM bytes: double-buffered x slab + ~2x f32 tiles of headroom
    # for the upcast / x*w intermediates + double-buffered output block
    # (negligible when lane-dense, lane-padded to 128 when lane-sparse).
    out_row = 2 * 4 if lane_dense_out else 2 * _LANE * 4
    per_row = f_pad * (2 * itemsize + 2 * 4) + out_row

    tb_vmem = max(row_align, int(0.70 * vmem_limit) // per_row)
    # Keep the per-tile f32 working set around 8 MiB: big enough that the
    # ~0.35us per-step overhead is <10% of the HBM time, small enough that
    # register pressure / internal scratch stays sane.
    tb_work = max(row_align, (8 * _MiB) // (f_pad * 4))
    tb = min(tb_vmem, tb_work, batch)

    # Step-count floors: >=4 steps when the batch allows (pipeline overlap),
    # else >=2 steps so both v7x TensorCores get work on the "parallel" axis.
    if batch >= 4 * row_align:
        tb = min(tb, max(row_align, _round_down(batch // 4, row_align)))
    else:
        tb = min(tb, max(row_align, _round_down(batch // 2, row_align)))

    # Alignment: multiples of 128 rows when large (clean lane-dense stores),
    # otherwise sublane-granule multiples.
    if tb >= _LANE:
        tb = _round_down(tb, _LANE)
    else:
        tb = max(row_align, _round_down(tb, row_align))
    return tb, vmem_limit


def _linear_kernel(x_ref, w_ref, b_ref, o_ref, *, apply_sigmoid, lane_dense_out):
    """One batch tile: y = sum(x * w, -1) + b, optionally sigmoid.

    x_ref: (TB, F) VMEM          w_ref: (1, F) VMEM (lane-dense)
    b_ref: (1,)    SMEM scalar   o_ref: (1, 1, TB) VMEM (lane-dense)
                                        or (TB, 1) VMEM (fallback layout)
    """
    x = x_ref[...].astype(jnp.float32)
    w = w_ref[...].astype(jnp.float32)
    # N=1 output: VPU multiply + XLU lane reduce, f32 accumulation.
    y = jnp.sum(x * w, axis=-1, keepdims=True) + b_ref[0]     # (TB, 1)
    if apply_sigmoid:
        y = jax.nn.sigmoid(y)
    if lane_dense_out:
        # (TB, 1) -> (1, 1, TB): one small relayout per tile, hidden under the
        # x HBM read; gives unmasked lane-dense stores and a contiguous
        # writeback DMA.
        o_ref[...] = jnp.reshape(y, o_ref.shape).astype(o_ref.dtype)
    else:
        o_ref[...] = y.astype(o_ref.dtype)


def _forward_impl(x, weight, bias, apply_sigmoid, lane_dense_out):
    batch, num_features = x.shape
    tb, vmem_limit = _tile_plan(batch, num_features, x.dtype.itemsize,
                                lane_dense_out)
    num_tiles = pl.cdiv(batch, tb)

    kernel = functools.partial(_linear_kernel,
                               apply_sigmoid=bool(apply_sigmoid),
                               lane_dense_out=bool(lane_dense_out))

    cost = pl.CostEstimate(
        flops=2 * batch * num_features,
        transcendentals=(2 * batch) if apply_sigmoid else 0,
        bytes_accessed=(batch * num_features * x.dtype.itemsize
                        + num_features * weight.dtype.itemsize
                        + batch * 4),
    )

    in_specs = [
        pl.BlockSpec((tb, num_features), lambda i: (i, 0)),      # x tile
        pl.BlockSpec((1, num_features), lambda i: (0, 0)),       # weight row
        pl.BlockSpec(memory_space=pltpu.MemorySpace.SMEM),       # bias scalar
    ]
    if lane_dense_out:
        out_shape = jax.ShapeDtypeStruct((num_tiles, 1, tb), jnp.float32)
        out_spec = pl.BlockSpec((1, 1, tb), lambda i: (i, 0, 0))
    else:
        out_shape = jax.ShapeDtypeStruct((batch, 1), jnp.float32)
        out_spec = pl.BlockSpec((tb, 1), lambda i: (i, 0))

    out = pl.pallas_call(
        kernel,
        out_shape=out_shape,
        grid=(num_tiles,),
        in_specs=in_specs,
        out_specs=out_spec,
        compiler_params=pltpu.CompilerParams(
            dimension_semantics=("parallel",),      # megacore-shardable on v7x
            vmem_limit_bytes=int(vmem_limit),
        ),
        cost_estimate=cost,
    )(x, weight, bias)

    if lane_dense_out:
        # drop the padded tail rows of the last tile, flatten to (batch,)
        return out.reshape(num_tiles * tb)[:batch]
    return out.reshape(batch)


_LANE_DENSE_OK = None


def _lane_dense_supported():
    """One-time probe: compile + numerically check the lane-dense output path.

    Conservative guard so the module always runs even if a toolchain cannot
    lower the in-kernel (TB,1)->(1,TB) relayout; falls back to the proven
    lane-sparse (TB,1) output layout in that case.
    """
    global _LANE_DENSE_OK
    if _LANE_DENSE_OK is None:
        try:
            key = jax.random.PRNGKey(42)
            xp = jax.random.normal(key, (1024, 128), dtype=jnp.float32)
            wp = jnp.full((1, 128), 0.01, dtype=jnp.float32)
            bp = jnp.array([0.5], dtype=jnp.float32)
            got = jax.block_until_ready(_forward_impl(xp, wp, bp, False, True))
            want = jnp.sum(xp * wp[0], axis=-1) + bp[0]
            _LANE_DENSE_OK = bool(jnp.allclose(got, want, atol=1e-4))
        except Exception:
            _LANE_DENSE_OK = False
    return _LANE_DENSE_OK


def review_classifier_forward(x, weight, bias, apply_sigmoid=False):
    """Pallas equivalent of ReviewClassifier.forward.

    Args:
      x:      (batch, num_features) float32 or bfloat16.  bf16 activations are
              supported directly (no wrapper cast) and halve HBM traffic; the
              kernel accumulates in f32 either way.
      weight: (1, num_features) float32  -- PyTorch nn.Linear weight layout
      bias:   (1,) float32
      apply_sigmoid: static python bool
    Returns:
      (batch,) float32
    """
    # TODO(synk): torch's .squeeze() returns a 0-d tensor when batch == 1; we
    # always return shape (batch,) per the module docstring.
    return _forward_impl(x, weight, bias, apply_sigmoid,
                         _lane_dense_supported())


if __name__ == "__main__":
    key = jax.random.PRNGKey(0)
    k_x, k_w, k_b, k_x2, k_x3 = jax.random.split(key, 5)

    # --- small-shape check (module's expected (batch, num_features) input) ---
    batch, num_features = 2, 32
    x = jax.random.normal(k_x, (batch, num_features), dtype=jnp.float32)
    weight = jax.random.normal(k_w, (1, num_features), dtype=jnp.float32) * 0.1
    bias = jax.random.normal(k_b, (1,), dtype=jnp.float32) * 0.1

    logits = review_classifier_forward(x, weight, bias, apply_sigmoid=False)
    probs = review_classifier_forward(x, weight, bias, apply_sigmoid=True)
    jax.block_until_ready((logits, probs))

    ref_logits = jnp.sum(x * weight[0], axis=-1) + bias[0]   # full-f32 reference
    ref_probs = jax.nn.sigmoid(ref_logits)
    assert logits.shape == (batch,) and probs.shape == (batch,)
    assert jnp.allclose(logits, ref_logits, atol=1e-5), (logits, ref_logits)
    assert jnp.allclose(probs, ref_probs, atol=1e-5), (probs, ref_probs)

    # --- multi-tile f32 check: >=4 grid steps + ragged last block ------------
    b2, f2 = 2500, 128
    x2 = jax.random.normal(k_x2, (b2, f2), dtype=jnp.float32)
    w2 = jax.random.normal(k_w, (1, f2), dtype=jnp.float32) * 0.05
    bb2 = jax.random.normal(k_b, (1,), dtype=jnp.float32) * 0.05
    out2 = review_classifier_forward(x2, w2, bb2, apply_sigmoid=True)
    jax.block_until_ready(out2)
    ref2 = jax.nn.sigmoid(jnp.sum(x2 * w2[0], axis=-1) + bb2[0])
    assert out2.shape == (b2,)
    assert jnp.allclose(out2, ref2, atol=1e-5), float(jnp.abs(out2 - ref2).max())

    # --- bf16 activation path (halves HBM traffic, f32 accumulation) ---------
    b3, f3 = 300, 64
    x3 = jax.random.normal(k_x3, (b3, f3), dtype=jnp.float32).astype(jnp.bfloat16)
    w3 = jax.random.normal(k_w, (1, f3), dtype=jnp.float32) * 0.05
    bb3 = jax.random.normal(k_b, (1,), dtype=jnp.float32) * 0.05
    out3 = review_classifier_forward(x3, w3, bb3, apply_sigmoid=False)
    jax.block_until_ready(out3)
    ref3 = jnp.sum(x3.astype(jnp.float32) * w3[0], axis=-1) + bb3[0]
    assert out3.shape == (b3,)
    assert jnp.allclose(out3, ref3, atol=1e-5), float(jnp.abs(out3 - ref3).max())

    print("KERNEL_OK")
</pallas_src>

<mosaic_0001>
module attributes {stable_mosaic.version = 11 : i64} {
  func.func @_linear_kernel(%arg0: i32, %arg1: memref<256x128xf32, #tpu.memory_space<vmem>>, %arg2: memref<1x128xf32, #tpu.memory_space<vmem>>, %arg3: memref<1xf32, #tpu.memory_space<smem>>, %arg4: memref<1x1x256xf32, #tpu.memory_space<vmem>>) attributes {dimension_semantics = [#tpu.dimension_semantics<parallel>], iteration_bounds = array<i64: 4>, scalar_prefetch = 0 : i64, scratch_operands = 0 : i64, tpu.core_type = #tpu.core_type<tc>, window_params = [{transform_indices = @transform_0, window_bounds = array<i64: 256, 128>}, {pipeline_mode = #tpu.pipeline_mode<synchronous>, transform_indices = @transform_1, window_bounds = array<i64: 1, 128>}, {transform_indices = @transform_2, window_bounds = array<i64: 1>}, {transform_indices = @transform_3, window_bounds = array<i64: 1, 1, 256>}]} {
    %c0 = arith.constant 0 : index
    %c0_0 = arith.constant 0 : index
    %0 = vector.load %arg1[%c0, %c0_0] : memref<256x128xf32, #tpu.memory_space<vmem>>, vector<256x128xf32>
    %c0_1 = arith.constant 0 : index
    %c0_2 = arith.constant 0 : index
    %1 = vector.load %arg2[%c0_1, %c0_2] : memref<1x128xf32, #tpu.memory_space<vmem>>, vector<1x128xf32>
    %2 = vector.broadcast %1 : vector<1x128xf32> to vector<256x128xf32>
    %3 = arith.mulf %0, %2 : vector<256x128xf32>
    %cst = arith.constant dense<0.000000e+00> : vector<256xf32>
    %4 = vector.multi_reduction <add>, %3, %cst [1] : vector<256x128xf32> to vector<256xf32>
    %5 = vector.shape_cast %4 : vector<256xf32> to vector<256x1xf32>
    %c0_3 = arith.constant 0 : index
    %6 = memref.load %arg3[%c0_3] : memref<1xf32, #tpu.memory_space<smem>>
    %7 = vector.broadcast %6 : f32 to vector<256x1xf32>
    %8 = arith.addf %5, %7 : vector<256x1xf32>
    %9 = vector.shape_cast %8 : vector<256x1xf32> to vector<1x1x256xf32>
    %c0_4 = arith.constant 0 : index
    %c0_5 = arith.constant 0 : index
    %c0_6 = arith.constant 0 : index
    %10 = vector.load %arg4[%c0_4, %c0_5, %c0_6] : memref<1x1x256xf32, #tpu.memory_space<vmem>>, vector<1x1x256xf32>
    tpu.vector_store %arg4[%c0_4, %c0_5, %c0_6], %9 {strides = array<i32>} : memref<1x1x256xf32, #tpu.memory_space<vmem>>, vector<1x1x256xf32>,
    return
  }
  func.func @transform_0(%arg0: i32) -> (i32, i32) {
    %c0_i32 = arith.constant 0 : i32
    %c0_i32_0 = arith.constant 0 : i32
    return %arg0, %c0_i32 : i32, i32
  }
  func.func @transform_1(%arg0: i32) -> (i32, i32) {
    %c0_i32 = arith.constant 0 : i32
    %c0_i32_0 = arith.constant 0 : i32
    %c0_i32_1 = arith.constant 0 : i32
    return %c0_i32, %c0_i32_0 : i32, i32
  }
  func.func @transform_2(%arg0: i32) -> i32 {
    %c0_i32 = arith.constant 0 : i32
    %c0_i32_0 = arith.constant 0 : i32
    return %c0_i32 : i32
  }
  func.func @transform_3(%arg0: i32) -> (i32, i32, i32) {
    %c0_i32 = arith.constant 0 : i32
    %c0_i32_0 = arith.constant 0 : i32
    %c0_i32_1 = arith.constant 0 : i32
    return %arg0, %c0_i32, %c0_i32_0 : i32, i32, i32
  }
}

module attributes {stable_mosaic.version = 11 : i64} {
  func.func @_linear_kernel(%arg0: i32, %arg1: memref<2x32xf32, #tpu.memory_space<vmem>>, %arg2: memref<1x32xf32, #tpu.memory_space<vmem>>, %arg3: memref<1xf32, #tpu.memory_space<smem>>, %arg4: memref<2x1xf32, #tpu.memory_space<vmem>>) attributes {dimension_semantics = [#tpu.dimension_semantics<parallel>], iteration_bounds = array<i64: 1>, scalar_prefetch = 0 : i64, scratch_operands = 0 : i64, tpu.core_type = #tpu.core_type<tc>, window_params = [{transform_indices = @transform_0, window_bounds = array<i64: 2, 32>}, {pipeline_mode = #tpu.pipeline_mode<synchronous>, transform_indices = @transform_1, window_bounds = array<i64: 1, 32>}, {transform_indices = @transform_2, window_bounds = array<i64: 1>}, {transform_indices = @transform_3, window_bounds = array<i64: 2, 1>}]} {
    %c0 = arith.constant 0 : index
    %c0_0 = arith.constant 0 : index
    %0 = vector.load %arg1[%c0, %c0_0] : memref<2x32xf32, #tpu.memory_space<vmem>>, vector<2x32xf32>
    %c0_1 = arith.constant 0 : index
    %c0_2 = arith.constant 0 : index
    %1 = vector.load %arg2[%c0_1, %c0_2] : memref<1x32xf32, #tpu.memory_space<vmem>>, vector<1x32xf32>
    %2 = vector.broadcast %1 : vector<1x32xf32> to vector<2x32xf32>
    %3 = arith.mulf %0, %2 : vector<2x32xf32>
    %cst = arith.constant dense<0.000000e+00> : vector<2xf32>
    %4 = vector.multi_reduction <add>, %3, %cst [1] : vector<2x32xf32> to vector<2xf32>
    %5 = vector.shape_cast %4 : vector<2xf32> to vector<2x1xf32>
    %c0_3 = arith.constant 0 : index
    %6 = memref.load %arg3[%c0_3] : memref<1xf32, #tpu.memory_space<smem>>
    %7 = vector.broadcast %6 : f32 to vector<2x1xf32>
    %8 = arith.addf %5, %7 : vector<2x1xf32>
    %c0_4 = arith.constant 0 : index
    %c0_5 = arith.constant 0 : index
    %9 = vector.load %arg4[%c0_4, %c0_5] : memref<2x1xf32, #tpu.memory_space<vmem>>, vector<2x1xf32>
    tpu.vector_store %arg4[%c0_4, %c0_5], %8 {strides = array<i32>} : memref<2x1xf32, #tpu.memory_space<vmem>>, vector<2x1xf32>,
    return
  }
  func.func @transform_0(%arg0: i32) -> (i32, i32) {
    %c0_i32 = arith.constant 0 : i32
    %c0_i32_0 = arith.constant 0 : i32
    return %arg0, %c0_i32 : i32, i32
  }
  func.func @transform_1(%arg0: i32) -> (i32, i32) {
    %c0_i32 = arith.constant 0 : i32
    %c0_i32_0 = arith.constant 0 : i32
    %c0_i32_1 = arith.constant 0 : i32
    return %c0_i32, %c0_i32_0 : i32, i32
  }
  func.func @transform_2(%arg0: i32) -> i32 {
    %c0_i32 = arith.constant 0 : i32
    %c0_i32_0 = arith.constant 0 : i32
    return %c0_i32 : i32
  }
  func.func @transform_3(%arg0: i32) -> (i32, i32) {
    %c0_i32 = arith.constant 0 : i32
    %c0_i32_0 = arith.constant 0 : i32
    return %arg0, %c0_i32 : i32, i32
  }
}

</mosaic_0001>

<llo_original>
// kernel: tpu_custom_call.1
$region0: #{tpu_custom_call.1}
  #allocation0 [shape = 'u32[]', space=smem, size = 0x4, offset = 0x4, fixed_abs, tag = 'smem constant byte address 0x4 - core index']
  #allocation1 [shape = 'u32[144,128]{1,0:T(1,128)}', space=vmem, size = 0x12000, scoped, tag = 'internal scratch']
  #allocation2 [shape = 'f32[1]{0:T(128)S(6)}', space=smem, size = 0x200, scoped, tag = 'scoped memory for tpu_custom_call.1']
  %s0 = inlined_call_operand.hbm [shape: f32[1024,128], index: 0, kind: input, shape index: {}]
  %s1 = inlined_call_operand.vmem [shape: f32[1,128], index: 1, kind: input, shape index: {}]
  %s2 = inlined_call_operand.<no memory space> [shape: f32[1], index: 2, kind: input, shape index: {}]
  %s3 = inlined_call_operand.hbm [shape: f32[4,1,256], index: 3, kind: output, shape index: {}]
  %s4 = sld [smem:[#allocation0]]
  $region49: #{tpu_custom_call.1} parent=0
    _
  %s6 = ssub.s32 1, %s4
  %s7 = scalar_select 0, %s6, %s4
  %8 = sst [smem:[#allocation2]] %s2
  $region1: #{tpu_custom_call.1} parent=0
    #allocation3 [shape = 'u8[262144]{0}', space=vmem, size = 0x40000, scoped, tag = 'input window, operand 0']
    #allocation4 [shape = 's32[2]{0}', space=sflag, size = 0x8, scoped, tag = 'scoped memory for tpu_custom_call.1']
    #allocation5 [shape = 's32[2]{0}', space=sflag, size = 0x8, scoped, tag = 'scoped memory for tpu_custom_call.1']
    #allocation6 [shape = 'u8[2048]{0}', space=vmem, size = 0x800, scoped, tag = 'output window, operand 0']
    %9 = vsyncpa [#allocation4], 0
    %s10 = scalar_lea.sflag [#allocation4], 1
    %11 = vsyncpa %s10, 0
    %12 = vsyncpa [#allocation5], 0
    %s13 = scalar_lea.sflag [#allocation5], 1
    %14 = vsyncpa %s13, 0
    loop: start=0, step=1, limit=6
    $region2: #{tpu_custom_call.1} parent=1 // loop_pre_header
      _
    $region3: #{tpu_custom_call.1} parent=1 // loop_header
      %s16 = sphi 0, %s20
      %p17 = scmp.ge.s32.totalorder %s16, 6
      %s26 = sphi 0, %s28
      %s29 = sphi 0, %s26
      %s30 = sphi 0, %s29
      %s46 = sphi 0, %s30
      %s50 = sphi 0, %s50
      %s52 = sphi 0, %s50
      %s53 = sphi 0, %s52
      %s67 = sphi 0, %s53
      %s71 = sphi 0, %s71
      %s73 = sphi 0, %s71
      %s74 = sphi 0, %s73
      %s88 = sphi 0, %s74
      %s94 = sphi 0, %s96
      %s97 = sphi 0, %s94
      %s98 = sphi 0, %s97
      %s114 = sphi 0, %s98
    $region4: #{tpu_custom_call.1} parent=1 // loop_header_branch
      %19 = sbr.rel (%p17) target = $region8
    $region5: #{tpu_custom_call.1} parent=1 // loop_body
      %s21 = ssub.s32 %s16, 1
      %s22 = ssub.s32 %s16, 2
      %s23 = sadd.s32 %s16, 1
      %s24 = ssub.s32 %s16, %s23
      %p25 = scmp.eq.s32.totalorder %s24, 0
      %s27 = sadd.s32 %s26, 1
      %s28 = scalar_select %p25, %s26, %s27
      %p31 = pneg %p25
      %p32 = scmp.eq.s32.totalorder %s16, 3
      %p33 = por %p31, %p32
      %p34 = scmp.ne.s32.totalorder %s26, %s29
      %p35 = scmp.eq.s32.totalorder %s16, 0
      %p36 = por %p34, %p35
      %p37 = scmp.ne.s32.totalorder %s26, %s29
      %p38 = scmp.eq.s32.totalorder %s21, 3
      %p39 = por %p37, %p38
      %p40 = scmp.ne.s32.totalorder %s29, %s30
      %p41 = scmp.eq.s32.totalorder %s21, 0
      %p42 = por %p40, %p41
      %p43 = scmp.ne.s32.totalorder %s29, %s30
      %p44 = scmp.eq.s32.totalorder %s22, 3
      %p45 = por %p43, %p44
      %p47 = scmp.ne.s32.totalorder %s30, %s46
      %p48 = scmp.eq.s32.totalorder %s22, 0
      %p49 = por %p47, %p48
      %s51 = sadd.s32 %s50, 1
      %p54 = scmp.eq.s32.totalorder %s16, 3
      %p55 = scmp.ne.s32.totalorder %s50, %s52
      %p56 = scmp.eq.s32.totalorder %s16, 0
      %p57 = por %p55, %p56
      %p58 = scmp.ne.s32.totalorder %s50, %s52
      %p59 = scmp.eq.s32.totalorder %s21, 3
      %p60 = por %p58, %p59
      %p61 = scmp.ne.s32.totalorder %s52, %s53
      %p62 = scmp.eq.s32.totalorder %s21, 0
      %p63 = por %p61, %p62
      %p64 = scmp.ne.s32.totalorder %s52, %s53
      %p65 = scmp.eq.s32.totalorder %s22, 3
      %p66 = por %p64, %p65
      %p68 = scmp.ne.s32.totalorder %s53, %s67
      %p69 = scmp.eq.s32.totalorder %s22, 0
      %p70 = por %p68, %p69
      %s72 = sadd.s32 %s71, 1
      %p75 = scmp.eq.s32.totalorder %s16, 3
      %p76 = scmp.ne.s32.totalorder %s71, %s73
      %p77 = scmp.eq.s32.totalorder %s16, 0
      %p78 = por %p76, %p77
      %p79 = scmp.ne.s32.totalorder %s71, %s73
      %p80 = scmp.eq.s32.totalorder %s21, 3
      %p81 = por %p79, %p80
      %p82 = scmp.ne.s32.totalorder %s73, %s74
      %p83 = scmp.eq.s32.totalorder %s21, 0
      %p84 = por %p82, %p83
      %p85 = scmp.ne.s32.totalorder %s73, %s74
      %p86 = scmp.eq.s32.totalorder %s22, 3
      %p87 = por %p85, %p86
      %p89 = scmp.ne.s32.totalorder %s74, %s88
      %p90 = scmp.eq.s32.totalorder %s22, 0
      %p91 = por %p89, %p90
      %s92 = ssub.s32 %s16, %s23
      %p93 = scmp.eq.s32.totalorder %s92, 0
      %s95 = sadd.s32 %s94, 1
      %s96 = scalar_select %p93, %s94, %s95
      %p99 = pneg %p93
      %p100 = scmp.eq.s32.totalorder %s16, 3
      %p101 = por %p99, %p100
      %p102 = scmp.ne.s32.totalorder %s94, %s97
      %p103 = scmp.eq.s32.totalorder %s16, 0
      %p104 = por %p102, %p103
      %p105 = scmp.ne.s32.totalorder %s94, %s97
      %p106 = scmp.eq.s32.totalorder %s21, 3
      %p107 = por %p105, %p106
      %p108 = scmp.ne.s32.totalorder %s97, %s98
      %p109 = scmp.eq.s32.totalorder %s21, 0
      %p110 = por %p108, %p109
      %p111 = scmp.ne.s32.totalorder %s97, %s98
      %p112 = scmp.eq.s32.totalorder %s22, 3
      %p113 = por %p111, %p112
      %p115 = scmp.ne.s32.totalorder %s98, %s114
      %p116 = scmp.eq.s32.totalorder %s22, 0
      %p117 = por %p115, %p116
      %p118 = scmp.le.s32.totalorder 1, %s16
      %p119 = scmp.lt.s32.totalorder %s16, 5
      %p120 = pnand %p118, %p119
      %p121 = pneg %p120
      // Predicated region
      $region9: #{tpu_custom_call.1} parent=5 // pred_check
        _
      $region10: #{tpu_custom_call.1} parent=5 // pred_check_branch
        %123 = sbr.rel (%p120) target = $region12
      $region11: #{tpu_custom_call.1} parent=5 // pred_region
        %s124 = ssub.s32 %s16, 1
        // Predicated region
        $region13: #{tpu_custom_call.1} parent=11 // pred_check
          %p125 = pneg %p63
        $region14: #{tpu_custom_call.1} parent=11 // pred_check_branch
          %127 = sbr.rel (%p125) target = $region16
        $region15: #{tpu_custom_call.1} parent=11 // pred_region
          _
        $region16: #{tpu_custom_call.1} parent=11 // pred_fallthru
          _
        // Predicated region
        $region17: #{tpu_custom_call.1} parent=11 // pred_check
          %p128 = pneg %p84
        $region18: #{tpu_custom_call.1} parent=11 // pred_check_branch
          %130 = sbr.rel (%p128) target = $region20
        $region19: #{tpu_custom_call.1} parent=11 // pred_region
          _
        $region20: #{tpu_custom_call.1} parent=11 // pred_fallthru
          _
      $region12: #{tpu_custom_call.1} parent=5 // pred_fallthru
        _
      %p131 = scmp.lt.s32.totalorder %s16, 4
      // Predicated region
      $region21: #{tpu_custom_call.1} parent=5 // pred_check
        %p132 = pneg %p131
      $region22: #{tpu_custom_call.1} parent=5 // pred_check_branch
        %134 = sbr.rel (%p132) target = $region24
      $region23: #{tpu_custom_call.1} parent=5 // pred_region
        // Predicated region
        $region25: #{tpu_custom_call.1} parent=23 // pred_check
          %p135 = pneg %p36
        $region26: #{tpu_custom_call.1} parent=23 // pred_check_branch
          %137 = sbr.rel (%p135) target = $region28
        $region27: #{tpu_custom_call.1} parent=23 // pred_region
          %s138 = sand.u32 %s26, 1
          %s139 = scalar_lea.sflag [#allocation4], %s138
          %s140 = sand.u32 %s26, 1
          %s141 = smul.addr %s140, 256
          %s142 = scalar_lea.vmem [#allocation3], %s141
          %s143 = smul.u32 32, %s16
          %s145 = ssub.s32 4096, 4096
          %146 = vsyncadd %s139, %s145
          %s147 = smul.addr %s143, 128
          %s148 = scalar_lea.hbm %s0, %s147
          %s149 = sshll.u32 %s142, 4
          %s150 = int_to_ptr.vmem [resolvable:$true] %s149
          %155 = dma.hbm_to_vmem [thread:$0]  %s148, 4096, %s150, %s139, 128, 128, 8
        $region28: #{tpu_custom_call.1} parent=23 // pred_fallthru
          _
      $region24: #{tpu_custom_call.1} parent=5 // pred_fallthru
        _
      %p156 = scmp.le.s32.totalorder 1, %s16
      %p157 = scmp.lt.s32.totalorder %s16, 5
      %p158 = pnand %p156, %p157
      %p159 = pneg %p158
      // Predicated region
      $region29: #{tpu_custom_call.1} parent=5 // pred_check
        _
      $region30: #{tpu_custom_call.1} parent=5 // pred_check_branch
        %161 = sbr.rel (%p158) target = $region32
      $region31: #{tpu_custom_call.1} parent=5 // pred_region
        %s162 = ssub.s32 %s16, 1
        %s163 = sand.u32 %s29, 1
        %s164 = scalar_lea.sflag [#allocation4], %s163
        %s165 = sand.u32 %s29, 1
        %s166 = smul.addr %s165, 256
        %s167 = scalar_lea.vmem [#allocation3], %s166
        // Predicated region
        $region33: #{tpu_custom_call.1} parent=31 // pred_check
          %p168 = pneg %p42
        $region34: #{tpu_custom_call.1} parent=31 // pred_check_branch
          %170 = sbr.rel (%p168) target = $region36
        $region35: #{tpu_custom_call.1} parent=31 // pred_region
          %171 = dma.done %s164, 4096
        $region36: #{tpu_custom_call.1} parent=31 // pred_fallthru
          _
        %s172 = sand.u32 %s29, 1
        %s173 = scalar_lea.sflag [#allocation4], %s172
        %s174 = sand.u32 %s29, 1
        %s175 = smul.addr %s174, 256
        %s176 = scalar_lea.vmem [#allocation3], %s175
        %p177 = pneg %p42
        %p178 = pneg %p39
        %p179 = pneg %p63
        %p180 = pneg %p60
        %p181 = pneg %p84
        %p182 = pneg %p81
        %p183 = pneg %p110
        %p184 = pneg %p107
        %s185 = sand.u32 %s97, 1
        %s186 = scalar_lea.sflag [#allocation5], %s185
        %s187 = sand.u32 %s97, 1
        %s188 = smul.addr %s187, 2
        %s189 = scalar_lea.vmem [#allocation6], %s188
        %s190 = smul.u32 32, %s21
        %v191 = vld [vmem:[%s167] sm:$0xff]
        %v192 = vld [vmem:[%s167 + $0x8] sm:$0xff]
        %v193 = vld [vmem:[%s167 + $0x10] sm:$0xff]
        %v194 = vld [vmem:[%s167 + $0x18] sm:$0xff]
        %v195 = vld [vmem:[%s167 + $0x20] sm:$0xff]
        %v196 = vld [vmem:[%s167 + $0x28] sm:$0xff]
        %v197 = vld [vmem:[%s167 + $0x30] sm:$0xff]
        %v198 = vld [vmem:[%s167 + $0x38] sm:$0xff]
        %v199 = vld [vmem:[%s167 + $0x40] sm:$0xff]
        %v200 = vld [vmem:[%s167 + $0x48] sm:$0xff]
        %v201 = vld [vmem:[%s167 + $0x50] sm:$0xff]
        %v202 = vld [vmem:[%s167 + $0x58] sm:$0xff]
        %v203 = vld [vmem:[%s167 + $0x60] sm:$0xff]
        %v204 = vld [vmem:[%s167 + $0x68] sm:$0xff]
        %v205 = vld [vmem:[%s167 + $0x70] sm:$0xff]
        %v206 = vld [vmem:[%s167 + $0x78] sm:$0xff]
        %v207 = vld [vmem:[%s167 + $0x80] sm:$0xff]
        %v208 = vld [vmem:[%s167 + $0x88] sm:$0xff]
        %v209 = vld [vmem:[%s167 + $0x90] sm:$0xff]
        %v210 = vld [vmem:[%s167 + $0x98] sm:$0xff]
        %v211 = vld [vmem:[%s167 + $0xa0] sm:$0xff]
        %v212 = vld [vmem:[%s167 + $0xa8] sm:$0xff]
        %v213 = vld [vmem:[%s167 + $0xb0] sm:$0xff]
        %v214 = vld [vmem:[%s167 + $0xb8] sm:$0xff]
        %v215 = vld [vmem:[%s167 + $0xc0] sm:$0xff]
        %v216 = vld [vmem:[%s167 + $0xc8] sm:$0xff]
        %v217 = vld [vmem:[%s167 + $0xd0] sm:$0xff]
        %v218 = vld [vmem:[%s167 + $0xd8] sm:$0xff]
        %v219 = vld [vmem:[%s167 + $0xe0] sm:$0xff]
        %v220 = vld [vmem:[%s167 + $0xe8] sm:$0xff]
        %v221 = vld [vmem:[%s167 + $0xf0] sm:$0xff]
        %v222 = vld [vmem:[%s167 + $0xf8] sm:$0xff]
        %v223 = vld [vmem:[%s1] sm:$0x1]
        %v225 = vlaneseq
        %v226 = vshrl.u32 %v225, 7
        %v227 = vsub.s32 0, %v226
        %v228 = vrot.slane %v223, %v227
        %v230 = vmul.f32 %v191, %v228
        %v231 = vmul.f32 %v192, %v228
        %v232 = vmul.f32 %v193, %v228
        %v233 = vmul.f32 %v194, %v228
        %v234 = vmul.f32 %v195, %v228
        %v235 = vmul.f32 %v196, %v228
        %v236 = vmul.f32 %v197, %v228
        %v237 = vmul.f32 %v198, %v228
        %v238 = vmul.f32 %v199, %v228
        %v239 = vmul.f32 %v200, %v228
        %v240 = vmul.f32 %v201, %v228
        %v241 = vmul.f32 %v202, %v228
        %v242 = vmul.f32 %v203, %v228
        %v243 = vmul.f32 %v204, %v228
        %v244 = vmul.f32 %v205, %v228
        %v245 = vmul.f32 %v206, %v228
        %v246 = vmul.f32 %v207, %v228
        %v247 = vmul.f32 %v208, %v228
        %v248 = vmul.f32 %v209, %v228
        %v249 = vmul.f32 %v210, %v228
        %v250 = vmul.f32 %v211, %v228
        %v251 = vmul.f32 %v212, %v228
        %v252 = vmul.f32 %v213, %v228
        %v253 = vmul.f32 %v214, %v228
        %v254 = vmul.f32 %v215, %v228
        %v255 = vmul.f32 %v216, %v228
        %v256 = vmul.f32 %v217, %v228
        %v257 = vmul.f32 %v218, %v228
        %v258 = vmul.f32 %v219, %v228
        %v259 = vmul.f32 %v220, %v228
        %v260 = vmul.f32 %v221, %v228
        %v261 = vmul.f32 %v222, %v228
        %262 = vadd.xlane.f32.xlu0 %v230
        %v263 = vpop.xlane.xlu0 %262
        %264 = vadd.xlane.f32.xlu0 %v231
        %v265 = vpop.xlane.xlu0 %264
        %266 = vadd.xlane.f32.xlu0 %v232
        %v267 = vpop.xlane.xlu0 %266
        %268 = vadd.xlane.f32.xlu0 %v233
        %v269 = vpop.xlane.xlu0 %268
        %270 = vadd.xlane.f32.xlu0 %v234
        %v271 = vpop.xlane.xlu0 %270
        %272 = vadd.xlane.f32.xlu0 %v235
        %v273 = vpop.xlane.xlu0 %272
        %274 = vadd.xlane.f32.xlu0 %v236
        %v275 = vpop.xlane.xlu0 %274
        %276 = vadd.xlane.f32.xlu0 %v237
        %v277 = vpop.xlane.xlu0 %276
        %278 = vadd.xlane.f32.xlu0 %v238
        %v279 = vpop.xlane.xlu0 %278
        %280 = vadd.xlane.f32.xlu0 %v239
        %v281 = vpop.xlane.xlu0 %280
        %282 = vadd.xlane.f32.xlu0 %v240
        %v283 = vpop.xlane.xlu0 %282
        %284 = vadd.xlane.f32.xlu0 %v241
        %v285 = vpop.xlane.xlu0 %284
        %286 = vadd.xlane.f32.xlu0 %v242
        %v287 = vpop.xlane.xlu0 %286
        %288 = vadd.xlane.f32.xlu0 %v243
        %v289 = vpop.xlane.xlu0 %288
        %290 = vadd.xlane.f32.xlu0 %v244
        %v291 = vpop.xlane.xlu0 %290
        %292 = vadd.xlane.f32.xlu0 %v245
        %v293 = vpop.xlane.xlu0 %292
        %294 = vadd.xlane.f32.xlu0 %v246
        %v295 = vpop.xlane.xlu0 %294
        %296 = vadd.xlane.f32.xlu0 %v247
        %v297 = vpop.xlane.xlu0 %296
        %298 = vadd.xlane.f32.xlu0 %v248
        %v299 = vpop.xlane.xlu0 %298
        %300 = vadd.xlane.f32.xlu0 %v249
        %v301 = vpop.xlane.xlu0 %300
        %302 = vadd.xlane.f32.xlu0 %v250
        %v303 = vpop.xlane.xlu0 %302
        %304 = vadd.xlane.f32.xlu0 %v251
        %v305 = vpop.xlane.xlu0 %304
        %306 = vadd.xlane.f32.xlu0 %v252
        %v307 = vpop.xlane.xlu0 %306
        %308 = vadd.xlane.f32.xlu0 %v253
        %v309 = vpop.xlane.xlu0 %308
        %310 = vadd.xlane.f32.xlu0 %v254
        %v311 = vpop.xlane.xlu0 %310
        %312 = vadd.xlane.f32.xlu0 %v255
        %v313 = vpop.xlane.xlu0 %312
        %314 = vadd.xlane.f32.xlu0 %v256
        %v315 = vpop.xlane.xlu0 %314
        %316 = vadd.xlane.f32.xlu0 %v257
        %v317 = vpop.xlane.xlu0 %316
        %318 = vadd.xlane.f32.xlu0 %v258
        %v319 = vpop.xlane.xlu0 %318
        %320 = vadd.xlane.f32.xlu0 %v259
        %v321 = vpop.xlane.xlu0 %320
        %322 = vadd.xlane.f32.xlu0 %v260
        %v323 = vpop.xlane.xlu0 %322
        %324 = vadd.xlane.f32.xlu0 %v261
        %v325 = vpop.xlane.xlu0 %324
        %s326 = sld [smem:[#allocation2]]
        %v327 = vstv %s326
        %v328 = vadd.f32 %v263, %v327
        %v329 = vadd.f32 %v265, %v327
        %v330 = vadd.f32 %v267, %v327
        %v331 = vadd.f32 %v269, %v327
        %v332 = vadd.f32 %v271, %v327
        %v333 = vadd.f32 %v273, %v327
        %v334 = vadd.f32 %v275, %v327
        %v335 = vadd.f32 %v277, %v327
        %v336 = vadd.f32 %v279, %v327
        %v337 = vadd.f32 %v281, %v327
        %v338 = vadd.f32 %v283, %v327
        %v339 = vadd.f32 %v285, %v327
        %v340 = vadd.f32 %v287, %v327
        %v341 = vadd.f32 %v289, %v327
        %v342 = vadd.f32 %v291, %v327
        %v343 = vadd.f32 %v293, %v327
        %v344 = vadd.f32 %v295, %v327
        %v345 = vadd.f32 %v297, %v327
        %v346 = vadd.f32 %v299, %v327
        %v347 = vadd.f32 %v301, %v327
        %v348 = vadd.f32 %v303, %v327
        %v349 = vadd.f32 %v305, %v327
        %v350 = vadd.f32 %v307, %v327
        %v351 = vadd.f32 %v309, %v327
        %v352 = vadd.f32 %v311, %v327
        %v353 = vadd.f32 %v313, %v327
        %v354 = vadd.f32 %v315, %v327
        %v355 = vadd.f32 %v317, %v327
        %v356 = vadd.f32 %v319, %v327
        %v357 = vadd.f32 %v321, %v327
        %v358 = vadd.f32 %v323, %v327
        %v359 = vadd.f32 %v325, %v327
        %v392 = vlaneseq
        %v393 = vshrl.u32 %v392, 7
        %v394 = vsub.s32 0, %v393
        %v395 = vrot.slane %v328, %v394
        %v396 = vlaneseq
        %v397 = vshrl.u32 %v396, 7
        %v398 = vsub.s32 1, %v397
        %v399 = vrot.slane %v328, %v398
        %v400 = vlaneseq
        %v401 = vshrl.u32 %v400, 7
        %v402 = vsub.s32 2, %v401
        %v403 = vrot.slane %v328, %v402
        %v404 = vlaneseq
        %v405 = vshrl.u32 %v404, 7
        %v406 = vsub.s32 3, %v405
        %v407 = vrot.slane %v328, %v406
        %v408 = vlaneseq
        %v409 = vshrl.u32 %v408, 7
        %v410 = vsub.s32 4, %v409
        %v411 = vrot.slane %v328, %v410
        %v412 = vlaneseq
        %v413 = vshrl.u32 %v412, 7
        %v414 = vsub.s32 5, %v413
        %v415 = vrot.slane %v328, %v414
        %v416 = vlaneseq
        %v417 = vshrl.u32 %v416, 7
        %v418 = vsub.s32 6, %v417
        %v419 = vrot.slane %v328, %v418
        %v420 = vlaneseq
        %v421 = vshrl.u32 %v420, 7
        %v422 = vsub.s32 7, %v421
        %v423 = vrot.slane %v328, %v422
        %v424 = vlaneseq
        %v425 = vshrl.u32 %v424, 7
        %v426 = vsub.s32 0, %v425
        %v427 = vrot.slane %v329, %v426
        %v428 = vlaneseq
        %v429 = vshrl.u32 %v428, 7
        %v430 = vsub.s32 1, %v429
        %v431 = vrot.slane %v329, %v430
        %v432 = vlaneseq
        %v433 = vshrl.u32 %v432, 7
        %v434 = vsub.s32 2, %v433
        %v435 = vrot.slane %v329, %v434
        %v436 = vlaneseq
        %v437 = vshrl.u32 %v436, 7
        %v438 = vsub.s32 3, %v437
        %v439 = vrot.slane %v329, %v438
        %v440 = vlaneseq
        %v441 = vshrl.u32 %v440, 7
        %v442 = vsub.s32 4, %v441
        %v443 = vrot.slane %v329, %v442
        %v444 = vlaneseq
        %v445 = vshrl.u32 %v444, 7
        %v446 = vsub.s32 5, %v445
        %v447 = vrot.slane %v329, %v446
        %v448 = vlaneseq
        %v449 = vshrl.u32 %v448, 7
        %v450 = vsub.s32 6, %v449
        %v451 = vrot.slane %v329, %v450
        %v452 = vlaneseq
        %v453 = vshrl.u32 %v452, 7
        %v454 = vsub.s32 7, %v453
        %v455 = vrot.slane %v329, %v454
        %v456 = vlaneseq
        %v457 = vshrl.u32 %v456, 7
        %v458 = vsub.s32 0, %v457
        %v459 = vrot.slane %v330, %v458
        %v460 = vlaneseq
        %v461 = vshrl.u32 %v460, 7
        %v462 = vsub.s32 1, %v461
        %v463 = vrot.slane %v330, %v462
        %v464 = vlaneseq
        %v465 = vshrl.u32 %v464, 7
        %v466 = vsub.s32 2, %v465
        %v467 = vrot.slane %v330, %v466
        %v468 = vlaneseq
        %v469 = vshrl.u32 %v468, 7
        %v470 = vsub.s32 3, %v469
        %v471 = vrot.slane %v330, %v470
        %v472 = vlaneseq
        %v473 = vshrl.u32 %v472, 7
        %v474 = vsub.s32 4, %v473
        %v475 = vrot.slane %v330, %v474
        %v476 = vlaneseq
        %v477 = vshrl.u32 %v476, 7
        %v478 = vsub.s32 5, %v477
        %v479 = vrot.slane %v330, %v478
        %v480 = vlaneseq
        %v481 = vshrl.u32 %v480, 7
        %v482 = vsub.s32 6, %v481
        %v483 = vrot.slane %v330, %v482
        %v484 = vlaneseq
        %v485 = vshrl.u32 %v484, 7
        %v486 = vsub.s32 7, %v485
        %v487 = vrot.slane %v330, %v486
        %v488 = vlaneseq
        %v489 = vshrl.u32 %v488, 7
        %v490 = vsub.s32 0, %v489
        %v491 = vrot.slane %v331, %v490
        %v492 = vlaneseq
        %v493 = vshrl.u32 %v492, 7
        %v494 = vsub.s32 1, %v493
        %v495 = vrot.slane %v331, %v494
        %v496 = vlaneseq
        %v497 = vshrl.u32 %v496, 7
        %v498 = vsub.s32 2, %v497
        %v499 = vrot.slane %v331, %v498
        %v500 = vlaneseq
        %v501 = vshrl.u32 %v500, 7
        %v502 = vsub.s32 3, %v501
        %v503 = vrot.slane %v331, %v502
        %v504 = vlaneseq
        %v505 = vshrl.u32 %v504, 7
        %v506 = vsub.s32 4, %v505
        %v507 = vrot.slane %v331, %v506
        %v508 = vlaneseq
        %v509 = vshrl.u32 %v508, 7
        %v510 = vsub.s32 5, %v509
        %v511 = vrot.slane %v331, %v510
        %v512 = vlaneseq
        %v513 = vshrl.u32 %v512, 7
        %v514 = vsub.s32 6, %v513
        %v515 = vrot.slane %v331, %v514
        %v516 = vlaneseq
        %v517 = vshrl.u32 %v516, 7
        %v518 = vsub.s32 7, %v517
        %v519 = vrot.slane %v331, %v518
        %v520 = vlaneseq
        %v521 = vshrl.u32 %v520, 7
        %v522 = vsub.s32 0, %v521
        %v523 = vrot.slane %v332, %v522
        %v524 = vlaneseq
        %v525 = vshrl.u32 %v524, 7
        %v526 = vsub.s32 1, %v525
        %v527 = vrot.slane %v332, %v526
        %v528 = vlaneseq
        %v529 = vshrl.u32 %v528, 7
        %v530 = vsub.s32 2, %v529
        %v531 = vrot.slane %v332, %v530
        %v532 = vlaneseq
        %v533 = vshrl.u32 %v532, 7
        %v534 = vsub.s32 3, %v533
        %v535 = vrot.slane %v332, %v534
        %v536 = vlaneseq
        %v537 = vshrl.u32 %v536, 7
        %v538 = vsub.s32 4, %v537
        %v539 = vrot.slane %v332, %v538
        %v540 = vlaneseq
        %v541 = vshrl.u32 %v540, 7
        %v542 = vsub.s32 5, %v541
        %v543 = vrot.slane %v332, %v542
        %v544 = vlaneseq
        %v545 = vshrl.u32 %v544, 7
        %v546 = vsub.s32 6, %v545
        %v547 = vrot.slane %v332, %v546
        %v548 = vlaneseq
        %v549 = vshrl.u32 %v548, 7
        %v550 = vsub.s32 7, %v549
        %v551 = vrot.slane %v332, %v550
        %v552 = vlaneseq
        %v553 = vshrl.u32 %v552, 7
        %v554 = vsub.s32 0, %v553
        %v555 = vrot.slane %v333, %v554
        %v556 = vlaneseq
        %v557 = vshrl.u32 %v556, 7
        %v558 = vsub.s32 1, %v557
        %v559 = vrot.slane %v333, %v558
        %v560 = vlaneseq
        %v561 = vshrl.u32 %v560, 7
        %v562 = vsub.s32 2, %v561
        %v563 = vrot.slane %v333, %v562
        %v564 = vlaneseq
        %v565 = vshrl.u32 %v564, 7
        %v566 = vsub.s32 3, %v565
        %v567 = vrot.slane %v333, %v566
        %v568 = vlaneseq
        %v569 = vshrl.u32 %v568, 7
        %v570 = vsub.s32 4, %v569
        %v571 = vrot.slane %v333, %v570
        %v572 = vlaneseq
        %v573 = vshrl.u32 %v572, 7
        %v574 = vsub.s32 5, %v573
        %v575 = vrot.slane %v333, %v574
        %v576 = vlaneseq
        %v577 = vshrl.u32 %v576, 7
        %v578 = vsub.s32 6, %v577
        %v579 = vrot.slane %v333, %v578
        %v580 = vlaneseq
        %v581 = vshrl.u32 %v580, 7
        %v582 = vsub.s32 7, %v581
        %v583 = vrot.slane %v333, %v582
        %v584 = vlaneseq
        %v585 = vshrl.u32 %v584, 7
        %v586 = vsub.s32 0, %v585
        %v587 = vrot.slane %v334, %v586
        %v588 = vlaneseq
        %v589 = vshrl.u32 %v588, 7
        %v590 = vsub.s32 1, %v589
        %v591 = vrot.slane %v334, %v590
        %v592 = vlaneseq
        %v593 = vshrl.u32 %v592, 7
        %v594 = vsub.s32 2, %v593
        %v595 = vrot.slane %v334, %v594
        %v596 = vlaneseq
        %v597 = vshrl.u32 %v596, 7
        %v598 = vsub.s32 3, %v597
        %v599 = vrot.slane %v334, %v598
        %v600 = vlaneseq
        %v601 = vshrl.u32 %v600, 7
        %v602 = vsub.s32 4, %v601
        %v603 = vrot.slane %v334, %v602
        %v604 = vlaneseq
        %v605 = vshrl.u32 %v604, 7
        %v606 = vsub.s32 5, %v605
        %v607 = vrot.slane %v334, %v606
        %v608 = vlaneseq
        %v609 = vshrl.u32 %v608, 7
        %v610 = vsub.s32 6, %v609
        %v611 = vrot.slane %v334, %v610
        %v612 = vlaneseq
        %v613 = vshrl.u32 %v612, 7
        %v614 = vsub.s32 7, %v613
        %v615 = vrot.slane %v334, %v614
        %v616 = vlaneseq
        %v617 = vshrl.u32 %v616, 7
        %v618 = vsub.s32 0, %v617
        %v619 = vrot.slane %v335, %v618
        %v620 = vlaneseq
        %v621 = vshrl.u32 %v620, 7
        %v622 = vsub.s32 1, %v621
        %v623 = vrot.slane %v335, %v622
        %v624 = vlaneseq
        %v625 = vshrl.u32 %v624, 7
        %v626 = vsub.s32 2, %v625
        %v627 = vrot.slane %v335, %v626
        %v628 = vlaneseq
        %v629 = vshrl.u32 %v628, 7
        %v630 = vsub.s32 3, %v629
        %v631 = vrot.slane %v335, %v630
        %v632 = vlaneseq
        %v633 = vshrl.u32 %v632, 7
        %v634 = vsub.s32 4, %v633
        %v635 = vrot.slane %v335, %v634
        %v636 = vlaneseq
        %v637 = vshrl.u32 %v636, 7
        %v638 = vsub.s32 5, %v637
        %v639 = vrot.slane %v335, %v638
        %v640 = vlaneseq
        %v641 = vshrl.u32 %v640, 7
        %v642 = vsub.s32 6, %v641
        %v643 = vrot.slane %v335, %v642
        %v644 = vlaneseq
        %v645 = vshrl.u32 %v644, 7
        %v646 = vsub.s32 7, %v645
        %v647 = vrot.slane %v335, %v646
        %v648 = vlaneseq
        %v649 = vshrl.u32 %v648, 7
        %v650 = vsub.s32 0, %v649
        %v651 = vrot.slane %v336, %v650
        %v652 = vlaneseq
        %v653 = vshrl.u32 %v652, 7
        %v654 = vsub.s32 1, %v653
        %v655 = vrot.slane %v336, %v654
        %v656 = vlaneseq
        %v657 = vshrl.u32 %v656, 7
        %v658 = vsub.s32 2, %v657
        %v659 = vrot.slane %v336, %v658
        %v660 = vlaneseq
        %v661 = vshrl.u32 %v660, 7
        %v662 = vsub.s32 3, %v661
        %v663 = vrot.slane %v336, %v662
        %v664 = vlaneseq
        %v665 = vshrl.u32 %v664, 7
        %v666 = vsub.s32 4, %v665
        %v667 = vrot.slane %v336, %v666
        %v668 = vlaneseq
        %v669 = vshrl.u32 %v668, 7
        %v670 = vsub.s32 5, %v669
        %v671 = vrot.slane %v336, %v670
        %v672 = vlaneseq
        %v673 = vshrl.u32 %v672, 7
        %v674 = vsub.s32 6, %v673
        %v675 = vrot.slane %v336, %v674
        %v676 = vlaneseq
        %v677 = vshrl.u32 %v676, 7
        %v678 = vsub.s32 7, %v677
        %v679 = vrot.slane %v336, %v678
        %v680 = vlaneseq
        %v681 = vshrl.u32 %v680, 7
        %v682 = vsub.s32 0, %v681
        %v683 = vrot.slane %v337, %v682
        %v684 = vlaneseq
        %v685 = vshrl.u32 %v684, 7
        %v686 = vsub.s32 1, %v685
        %v687 = vrot.slane %v337, %v686
        %v688 = vlaneseq
        %v689 = vshrl.u32 %v688, 7
        %v690 = vsub.s32 2, %v689
        %v691 = vrot.slane %v337, %v690
        %v692 = vlaneseq
        %v693 = vshrl.u32 %v692, 7
        %v694 = vsub.s32 3, %v693
        %v695 = vrot.slane %v337, %v694
        %v696 = vlaneseq
        %v697 = vshrl.u32 %v696, 7
        %v698 = vsub.s32 4, %v697
        %v699 = vrot.slane %v337, %v698
        %v700 = vlaneseq
        %v701 = vshrl.u32 %v700, 7
        %v702 = vsub.s32 5, %v701
        %v703 = vrot.slane %v337, %v702
        %v704 = vlaneseq
        %v705 = vshrl.u32 %v704, 7
        %v706 = vsub.s32 6, %v705
        %v707 = vrot.slane %v337, %v706
        %v708 = vlaneseq
        %v709 = vshrl.u32 %v708, 7
        %v710 = vsub.s32 7, %v709
        %v711 = vrot.slane %v337, %v710
        %v712 = vlaneseq
        %v713 = vshrl.u32 %v712, 7
        %v714 = vsub.s32 0, %v713
        %v715 = vrot.slane %v338, %v714
        %v716 = vlaneseq
        %v717 = vshrl.u32 %v716, 7
        %v718 = vsub.s32 1, %v717
        %v719 = vrot.slane %v338, %v718
        %v720 = vlaneseq
        %v721 = vshrl.u32 %v720, 7
        %v722 = vsub.s32 2, %v721
        %v723 = vrot.slane %v338, %v722
        %v724 = vlaneseq
        %v725 = vshrl.u32 %v724, 7
        %v726 = vsub.s32 3, %v725
        %v727 = vrot.slane %v338, %v726
        %v728 = vlaneseq
        %v729 = vshrl.u32 %v728, 7
        %v730 = vsub.s32 4, %v729
        %v731 = vrot.slane %v338, %v730
        %v732 = vlaneseq
        %v733 = vshrl.u32 %v732, 7
        %v734 = vsub.s32 5, %v733
        %v735 = vrot.slane %v338, %v734
        %v736 = vlaneseq
        %v737 = vshrl.u32 %v736, 7
        %v738 = vsub.s32 6, %v737
        %v739 = vrot.slane %v338, %v738
        %v740 = vlaneseq
        %v741 = vshrl.u32 %v740, 7
        %v742 = vsub.s32 7, %v741
        %v743 = vrot.slane %v338, %v742
        %v744 = vlaneseq
        %v745 = vshrl.u32 %v744, 7
        %v746 = vsub.s32 0, %v745
        %v747 = vrot.slane %v339, %v746
        %v748 = vlaneseq
        %v749 = vshrl.u32 %v748, 7
        %v750 = vsub.s32 1, %v749
        %v751 = vrot.slane %v339, %v750
        %v752 = vlaneseq
        %v753 = vshrl.u32 %v752, 7
        %v754 = vsub.s32 2, %v753
        %v755 = vrot.slane %v339, %v754
        %v756 = vlaneseq
        %v757 = vshrl.u32 %v756, 7
        %v758 = vsub.s32 3, %v757
        %v759 = vrot.slane %v339, %v758
        %v760 = vlaneseq
        %v761 = vshrl.u32 %v760, 7
        %v762 = vsub.s32 4, %v761
        %v763 = vrot.slane %v339, %v762
        %v764 = vlaneseq
        %v765 = vshrl.u32 %v764, 7
        %v766 = vsub.s32 5, %v765
        %v767 = vrot.slane %v339, %v766
        %v768 = vlaneseq
        %v769 = vshrl.u32 %v768, 7
        %v770 = vsub.s32 6, %v769
        %v771 = vrot.slane %v339, %v770
        %v772 = vlaneseq
        %v773 = vshrl.u32 %v772, 7
        %v774 = vsub.s32 7, %v773
        %v775 = vrot.slane %v339, %v774
        %v776 = vlaneseq
        %v777 = vshrl.u32 %v776, 7
        %v778 = vsub.s32 0, %v777
        %v779 = vrot.slane %v340, %v778
        %v780 = vlaneseq
        %v781 = vshrl.u32 %v780, 7
        %v782 = vsub.s32 1, %v781
        %v783 = vrot.slane %v340, %v782
        %v784 = vlaneseq
        %v785 = vshrl.u32 %v784, 7
        %v786 = vsub.s32 2, %v785
        %v787 = vrot.slane %v340, %v786
        %v788 = vlaneseq
        %v789 = vshrl.u32 %v788, 7
        %v790 = vsub.s32 3, %v789
        %v791 = vrot.slane %v340, %v790
        %v792 = vlaneseq
        %v793 = vshrl.u32 %v792, 7
        %v794 = vsub.s32 4, %v793
        %v795 = vrot.slane %v340, %v794
        %v796 = vlaneseq
        %v797 = vshrl.u32 %v796, 7
        %v798 = vsub.s32 5, %v797
        %v799 = vrot.slane %v340, %v798
        %v800 = vlaneseq
        %v801 = vshrl.u32 %v800, 7
        %v802 = vsub.s32 6, %v801
        %v803 = vrot.slane %v340, %v802
        %v804 = vlaneseq
        %v805 = vshrl.u32 %v804, 7
        %v806 = vsub.s32 7, %v805
        %v807 = vrot.slane %v340, %v806
        %v808 = vlaneseq
        %v809 = vshrl.u32 %v808, 7
        %v810 = vsub.s32 0, %v809
        %v811 = vrot.slane %v341, %v810
        %v812 = vlaneseq
        %v813 = vshrl.u32 %v812, 7
        %v814 = vsub.s32 1, %v813
        %v815 = vrot.slane %v341, %v814
        %v816 = vlaneseq
        %v817 = vshrl.u32 %v816, 7
        %v818 = vsub.s32 2, %v817
        %v819 = vrot.slane %v341, %v818
        %v820 = vlaneseq
        %v821 = vshrl.u32 %v820, 7
        %v822 = vsub.s32 3, %v821
        %v823 = vrot.slane %v341, %v822
        %v824 = vlaneseq
        %v825 = vshrl.u32 %v824, 7
        %v826 = vsub.s32 4, %v825
        %v827 = vrot.slane %v341, %v826
        %v828 = vlaneseq
        %v829 = vshrl.u32 %v828, 7
        %v830 = vsub.s32 5, %v829
        %v831 = vrot.slane %v341, %v830
        %v832 = vlaneseq
        %v833 = vshrl.u32 %v832, 7
        %v834 = vsub.s32 6, %v833
        %v835 = vrot.slane %v341, %v834
        %v836 = vlaneseq
        %v837 = vshrl.u32 %v836, 7
        %v838 = vsub.s32 7, %v837
        %v839 = vrot.slane %v341, %v838
        %v840 = vlaneseq
        %v841 = vshrl.u32 %v840, 7
        %v842 = vsub.s32 0, %v841
        %v843 = vrot.slane %v342, %v842
        %v844 = vlaneseq
        %v845 = vshrl.u32 %v844, 7
        %v846 = vsub.s32 1, %v845
        %v847 = vrot.slane %v342, %v846
        %v848 = vlaneseq
        %v849 = vshrl.u32 %v848, 7
        %v850 = vsub.s32 2, %v849
        %v851 = vrot.slane %v342, %v850
        %v852 = vlaneseq
        %v853 = vshrl.u32 %v852, 7
        %v854 = vsub.s32 3, %v853
        %v855 = vrot.slane %v342, %v854
        %v856 = vlaneseq
        %v857 = vshrl.u32 %v856, 7
        %v858 = vsub.s32 4, %v857
        %v859 = vrot.slane %v342, %v858
        %v860 = vlaneseq
        %v861 = vshrl.u32 %v860, 7
        %v862 = vsub.s32 5, %v861
        %v863 = vrot.slane %v342, %v862
        %v864 = vlaneseq
        %v865 = vshrl.u32 %v864, 7
        %v866 = vsub.s32 6, %v865
        %v867 = vrot.slane %v342, %v866
        %v868 = vlaneseq
        %v869 = vshrl.u32 %v868, 7
        %v870 = vsub.s32 7, %v869
        %v871 = vrot.slane %v342, %v870
        %v872 = vlaneseq
        %v873 = vshrl.u32 %v872, 7
        %v874 = vsub.s32 0, %v873
        %v875 = vrot.slane %v343, %v874
        %v876 = vlaneseq
        %v877 = vshrl.u32 %v876, 7
        %v878 = vsub.s32 1, %v877
        %v879 = vrot.slane %v343, %v878
        %v880 = vlaneseq
        %v881 = vshrl.u32 %v880, 7
        %v882 = vsub.s32 2, %v881
        %v883 = vrot.slane %v343, %v882
        %v884 = vlaneseq
        %v885 = vshrl.u32 %v884, 7
        %v886 = vsub.s32 3, %v885
        %v887 = vrot.slane %v343, %v886
        %v888 = vlaneseq
        %v889 = vshrl.u32 %v888, 7
        %v890 = vsub.s32 4, %v889
        %v891 = vrot.slane %v343, %v890
        %v892 = vlaneseq
        %v893 = vshrl.u32 %v892, 7
        %v894 = vsub.s32 5, %v893
        %v895 = vrot.slane %v343, %v894
        %v896 = vlaneseq
        %v897 = vshrl.u32 %v896, 7
        %v898 = vsub.s32 6, %v897
        %v899 = vrot.slane %v343, %v898
        %v900 = vlaneseq
        %v901 = vshrl.u32 %v900, 7
        %v902 = vsub.s32 7, %v901
        %v903 = vrot.slane %v343, %v902
        %v904 = vlaneseq
        %v905 = vshrl.u32 %v904, 7
        %v906 = vsub.s32 0, %v905
        %v907 = vrot.slane %v344, %v906
        %v908 = vlaneseq
        %v909 = vshrl.u32 %v908, 7
        %v910 = vsub.s32 1, %v909
        %v911 = vrot.slane %v344, %v910
        %v912 = vlaneseq
        %v913 = vshrl.u32 %v912, 7
        %v914 = vsub.s32 2, %v913
        %v915 = vrot.slane %v344, %v914
        %v916 = vlaneseq
        %v917 = vshrl.u32 %v916, 7
        %v918 = vsub.s32 3, %v917
        %v919 = vrot.slane %v344, %v918
        %v920 = vlaneseq
        %v921 = vshrl.u32 %v920, 7
        %v922 = vsub.s32 4, %v921
        %v923 = vrot.slane %v344, %v922
        %v924 = vlaneseq
        %v925 = vshrl.u32 %v924, 7
        %v926 = vsub.s32 5, %v925
        %v927 = vrot.slane %v344, %v926
        %v928 = vlaneseq
        %v929 = vshrl.u32 %v928, 7
        %v930 = vsub.s32 6, %v929
        %v931 = vrot.slane %v344, %v930
        %v932 = vlaneseq
        %v933 = vshrl.u32 %v932, 7
        %v934 = vsub.s32 7, %v933
        %v935 = vrot.slane %v344, %v934
        %v936 = vlaneseq
        %v937 = vshrl.u32 %v936, 7
        %v938 = vsub.s32 0, %v937
        %v939 = vrot.slane %v345, %v938
        %v940 = vlaneseq
        %v941 = vshrl.u32 %v940, 7
        %v942 = vsub.s32 1, %v941
        %v943 = vrot.slane %v345, %v942
        %v944 = vlaneseq
        %v945 = vshrl.u32 %v944, 7
        %v946 = vsub.s32 2, %v945
        %v947 = vrot.slane %v345, %v946
        %v948 = vlaneseq
        %v949 = vshrl.u32 %v948, 7
        %v950 = vsub.s32 3, %v949
        %v951 = vrot.slane %v345, %v950
        %v952 = vlaneseq
        %v953 = vshrl.u32 %v952, 7
        %v954 = vsub.s32 4, %v953
        %v955 = vrot.slane %v345, %v954
        %v956 = vlaneseq
        %v957 = vshrl.u32 %v956, 7
        %v958 = vsub.s32 5, %v957
        %v959 = vrot.slane %v345, %v958
        %v960 = vlaneseq
        %v961 = vshrl.u32 %v960, 7
        %v962 = vsub.s32 6, %v961
        %v963 = vrot.slane %v345, %v962
        %v964 = vlaneseq
        %v965 = vshrl.u32 %v964, 7
        %v966 = vsub.s32 7, %v965
        %v967 = vrot.slane %v345, %v966
        %v968 = vlaneseq
        %v969 = vshrl.u32 %v968, 7
        %v970 = vsub.s32 0, %v969
        %v971 = vrot.slane %v346, %v970
        %v972 = vlaneseq
        %v973 = vshrl.u32 %v972, 7
        %v974 = vsub.s32 1, %v973
        %v975 = vrot.slane %v346, %v974
        %v976 = vlaneseq
        %v977 = vshrl.u32 %v976, 7
        %v978 = vsub.s32 2, %v977
        %v979 = vrot.slane %v346, %v978
        %v980 = vlaneseq
        %v981 = vshrl.u32 %v980, 7
        %v982 = vsub.s32 3, %v981
        %v983 = vrot.slane %v346, %v982
        %v984 = vlaneseq
        %v985 = vshrl.u32 %v984, 7
        %v986 = vsub.s32 4, %v985
        %v987 = vrot.slane %v346, %v986
        %v988 = vlaneseq
        %v989 = vshrl.u32 %v988, 7
        %v990 = vsub.s32 5, %v989
        %v991 = vrot.slane %v346, %v990
        %v992 = vlaneseq
        %v993 = vshrl.u32 %v992, 7
        %v994 = vsub.s32 6, %v993
        %v995 = vrot.slane %v346, %v994
        %v996 = vlaneseq
        %v997 = vshrl.u32 %v996, 7
        %v998 = vsub.s32 7, %v997
        %v999 = vrot.slane %v346, %v998
        %v1000 = vlaneseq
        %v1001 = vshrl.u32 %v1000, 7
        %v1002 = vsub.s32 0, %v1001
        %v1003 = vrot.slane %v347, %v1002
        %v1004 = vlaneseq
        %v1005 = vshrl.u32 %v1004, 7
        %v1006 = vsub.s32 1, %v1005
        %v1007 = vrot.slane %v347, %v1006
        %v1008 = vlaneseq
        %v1009 = vshrl.u32 %v1008, 7
        %v1010 = vsub.s32 2, %v1009
        %v1011 = vrot.slane %v347, %v1010
        %v1012 = vlaneseq
        %v1013 = vshrl.u32 %v1012, 7
        %v1014 = vsub.s32 3, %v1013
        %v1015 = vrot.slane %v347, %v1014
        %v1016 = vlaneseq
        %v1017 = vshrl.u32 %v1016, 7
        %v1018 = vsub.s32 4, %v1017
        %v1019 = vrot.slane %v347, %v1018
        %v1020 = vlaneseq
        %v1021 = vshrl.u32 %v1020, 7
        %v1022 = vsub.s32 5, %v1021
        %v1023 = vrot.slane %v347, %v1022
        %v1024 = vlaneseq
        %v1025 = vshrl.u32 %v1024, 7
        %v1026 = vsub.s32 6, %v1025
        %v1027 = vrot.slane %v347, %v1026
        %v1028 = vlaneseq
        %v1029 = vshrl.u32 %v1028, 7
        %v1030 = vsub.s32 7, %v1029
        %v1031 = vrot.slane %v347, %v1030
        %v1032 = vlaneseq
        %v1033 = vshrl.u32 %v1032, 7
        %v1034 = vsub.s32 0, %v1033
        %v1035 = vrot.slane %v348, %v1034
        %v1036 = vlaneseq
        %v1037 = vshrl.u32 %v1036, 7
        %v1038 = vsub.s32 1, %v1037
        %v1039 = vrot.slane %v348, %v1038
        %v1040 = vlaneseq
        %v1041 = vshrl.u32 %v1040, 7
        %v1042 = vsub.s32 2, %v1041
        %v1043 = vrot.slane %v348, %v1042
        %v1044 = vlaneseq
        %v1045 = vshrl.u32 %v1044, 7
        %v1046 = vsub.s32 3, %v1045
        %v1047 = vrot.slane %v348, %v1046
        %v1048 = vlaneseq
        %v1049 = vshrl.u32 %v1048, 7
        %v1050 = vsub.s32 4, %v1049
        %v1051 = vrot.slane %v348, %v1050
        %v1052 = vlaneseq
        %v1053 = vshrl.u32 %v1052, 7
        %v1054 = vsub.s32 5, %v1053
        %v1055 = vrot.slane %v348, %v1054
        %v1056 = vlaneseq
        %v1057 = vshrl.u32 %v1056, 7
        %v1058 = vsub.s32 6, %v1057
        %v1059 = vrot.slane %v348, %v1058
        %v1060 = vlaneseq
        %v1061 = vshrl.u32 %v1060, 7
        %v1062 = vsub.s32 7, %v1061
        %v1063 = vrot.slane %v348, %v1062
        %v1064 = vlaneseq
        %v1065 = vshrl.u32 %v1064, 7
        %v1066 = vsub.s32 0, %v1065
        %v1067 = vrot.slane %v349, %v1066
        %v1068 = vlaneseq
        %v1069 = vshrl.u32 %v1068, 7
        %v1070 = vsub.s32 1, %v1069
        %v1071 = vrot.slane %v349, %v1070
        %v1072 = vlaneseq
        %v1073 = vshrl.u32 %v1072, 7
        %v1074 = vsub.s32 2, %v1073
        %v1075 = vrot.slane %v349, %v1074
        %v1076 = vlaneseq
        %v1077 = vshrl.u32 %v1076, 7
        %v1078 = vsub.s32 3, %v1077
        %v1079 = vrot.slane %v349, %v1078
        %v1080 = vlaneseq
        %v1081 = vshrl.u32 %v1080, 7
        %v1082 = vsub.s32 4, %v1081
        %v1083 = vrot.slane %v349, %v1082
        %v1084 = vlaneseq
        %v1085 = vshrl.u32 %v1084, 7
        %v1086 = vsub.s32 5, %v1085
        %v1087 = vrot.slane %v349, %v1086
        %v1088 = vlaneseq
        %v1089 = vshrl.u32 %v1088, 7
        %v1090 = vsub.s32 6, %v1089
        %v1091 = vrot.slane %v349, %v1090
        %v1092 = vlaneseq
        %v1093 = vshrl.u32 %v1092, 7
        %v1094 = vsub.s32 7, %v1093
        %v1095 = vrot.slane %v349, %v1094
        %v1096 = vlaneseq
        %v1097 = vshrl.u32 %v1096, 7
        %v1098 = vsub.s32 0, %v1097
        %v1099 = vrot.slane %v350, %v1098
        %v1100 = vlaneseq
        %v1101 = vshrl.u32 %v1100, 7
        %v1102 = vsub.s32 1, %v1101
        %v1103 = vrot.slane %v350, %v1102
        %v1104 = vlaneseq
        %v1105 = vshrl.u32 %v1104, 7
        %v1106 = vsub.s32 2, %v1105
        %v1107 = vrot.slane %v350, %v1106
        %v1108 = vlaneseq
        %v1109 = vshrl.u32 %v1108, 7
        %v1110 = vsub.s32 3, %v1109
        %v1111 = vrot.slane %v350, %v1110
        %v1112 = vlaneseq
        %v1113 = vshrl.u32 %v1112, 7
        %v1114 = vsub.s32 4, %v1113
        %v1115 = vrot.slane %v350, %v1114
        %v1116 = vlaneseq
        %v1117 = vshrl.u32 %v1116, 7
        %v1118 = vsub.s32 5, %v1117
        %v1119 = vrot.slane %v350, %v1118
        %v1120 = vlaneseq
        %v1121 = vshrl.u32 %v1120, 7
        %v1122 = vsub.s32 6, %v1121
        %v1123 = vrot.slane %v350, %v1122
        %v1124 = vlaneseq
        %v1125 = vshrl.u32 %v1124, 7
        %v1126 = vsub.s32 7, %v1125
        %v1127 = vrot.slane %v350, %v1126
        %v1128 = vlaneseq
        %v1129 = vshrl.u32 %v1128, 7
        %v1130 = vsub.s32 0, %v1129
        %v1131 = vrot.slane %v351, %v1130
        %v1132 = vlaneseq
        %v1133 = vshrl.u32 %v1132, 7
        %v1134 = vsub.s32 1, %v1133
        %v1135 = vrot.slane %v351, %v1134
        %v1136 = vlaneseq
        %v1137 = vshrl.u32 %v1136, 7
        %v1138 = vsub.s32 2, %v1137
        %v1139 = vrot.slane %v351, %v1138
        %v1140 = vlaneseq
        %v1141 = vshrl.u32 %v1140, 7
        %v1142 = vsub.s32 3, %v1141
        %v1143 = vrot.slane %v351, %v1142
        %v1144 = vlaneseq
        %v1145 = vshrl.u32 %v1144, 7
        %v1146 = vsub.s32 4, %v1145
        %v1147 = vrot.slane %v351, %v1146
        %v1148 = vlaneseq
        %v1149 = vshrl.u32 %v1148, 7
        %v1150 = vsub.s32 5, %v1149
        %v1151 = vrot.slane %v351, %v1150
        %v1152 = vlaneseq
        %v1153 = vshrl.u32 %v1152, 7
        %v1154 = vsub.s32 6, %v1153
        %v1155 = vrot.slane %v351, %v1154
        %v1156 = vlaneseq
        %v1157 = vshrl.u32 %v1156, 7
        %v1158 = vsub.s32 7, %v1157
        %v1159 = vrot.slane %v351, %v1158
        %v1160 = vlaneseq
        %v1161 = vshrl.u32 %v1160, 7
        %v1162 = vsub.s32 0, %v1161
        %v1163 = vrot.slane %v352, %v1162
        %v1164 = vlaneseq
        %v1165 = vshrl.u32 %v1164, 7
        %v1166 = vsub.s32 1, %v1165
        %v1167 = vrot.slane %v352, %v1166
        %v1168 = vlaneseq
        %v1169 = vshrl.u32 %v1168, 7
        %v1170 = vsub.s32 2, %v1169
        %v1171 = vrot.slane %v352, %v1170
        %v1172 = vlaneseq
        %v1173 = vshrl.u32 %v1172, 7
        %v1174 = vsub.s32 3, %v1173
        %v1175 = vrot.slane %v352, %v1174
        %v1176 = vlaneseq
        %v1177 = vshrl.u32 %v1176, 7
        %v1178 = vsub.s32 4, %v1177
        %v1179 = vrot.slane %v352, %v1178
        %v1180 = vlaneseq
        %v1181 = vshrl.u32 %v1180, 7
        %v1182 = vsub.s32 5, %v1181
        %v1183 = vrot.slane %v352, %v1182
        %v1184 = vlaneseq
        %v1185 = vshrl.u32 %v1184, 7
        %v1186 = vsub.s32 6, %v1185
        %v1187 = vrot.slane %v352, %v1186
        %v1188 = vlaneseq
        %v1189 = vshrl.u32 %v1188, 7
        %v1190 = vsub.s32 7, %v1189
        %v1191 = vrot.slane %v352, %v1190
        %v1192 = vlaneseq
        %v1193 = vshrl.u32 %v1192, 7
        %v1194 = vsub.s32 0, %v1193
        %v1195 = vrot.slane %v353, %v1194
        %v1196 = vlaneseq
        %v1197 = vshrl.u32 %v1196, 7
        %v1198 = vsub.s32 1, %v1197
        %v1199 = vrot.slane %v353, %v1198
        %v1200 = vlaneseq
        %v1201 = vshrl.u32 %v1200, 7
        %v1202 = vsub.s32 2, %v1201
        %v1203 = vrot.slane %v353, %v1202
        %v1204 = vlaneseq
        %v1205 = vshrl.u32 %v1204, 7
        %v1206 = vsub.s32 3, %v1205
        %v1207 = vrot.slane %v353, %v1206
        %v1208 = vlaneseq
        %v1209 = vshrl.u32 %v1208, 7
        %v1210 = vsub.s32 4, %v1209
        %v1211 = vrot.slane %v353, %v1210
        %v1212 = vlaneseq
        %v1213 = vshrl.u32 %v1212, 7
        %v1214 = vsub.s32 5, %v1213
        %v1215 = vrot.slane %v353, %v1214
        %v1216 = vlaneseq
        %v1217 = vshrl.u32 %v1216, 7
        %v1218 = vsub.s32 6, %v1217
        %v1219 = vrot.slane %v353, %v1218
        %v1220 = vlaneseq
        %v1221 = vshrl.u32 %v1220, 7
        %v1222 = vsub.s32 7, %v1221
        %v1223 = vrot.slane %v353, %v1222
        %v1224 = vlaneseq
        %v1225 = vshrl.u32 %v1224, 7
        %v1226 = vsub.s32 0, %v1225
        %v1227 = vrot.slane %v354, %v1226
        %v1228 = vlaneseq
        %v1229 = vshrl.u32 %v1228, 7
        %v1230 = vsub.s32 1, %v1229
        %v1231 = vrot.slane %v354, %v1230
        %v1232 = vlaneseq
        %v1233 = vshrl.u32 %v1232, 7
        %v1234 = vsub.s32 2, %v1233
        %v1235 = vrot.slane %v354, %v1234
        %v1236 = vlaneseq
        %v1237 = vshrl.u32 %v1236, 7
        %v1238 = vsub.s32 3, %v1237
        %v1239 = vrot.slane %v354, %v1238
        %v1240 = vlaneseq
        %v1241 = vshrl.u32 %v1240, 7
        %v1242 = vsub.s32 4, %v1241
        %v1243 = vrot.slane %v354, %v1242
        %v1244 = vlaneseq
        %v1245 = vshrl.u32 %v1244, 7
        %v1246 = vsub.s32 5, %v1245
        %v1247 = vrot.slane %v354, %v1246
        %v1248 = vlaneseq
        %v1249 = vshrl.u32 %v1248, 7
        %v1250 = vsub.s32 6, %v1249
        %v1251 = vrot.slane %v354, %v1250
        %v1252 = vlaneseq
        %v1253 = vshrl.u32 %v1252, 7
        %v1254 = vsub.s32 7, %v1253
        %v1255 = vrot.slane %v354, %v1254
        %v1256 = vlaneseq
        %v1257 = vshrl.u32 %v1256, 7
        %v1258 = vsub.s32 0, %v1257
        %v1259 = vrot.slane %v355, %v1258
        %v1260 = vlaneseq
        %v1261 = vshrl.u32 %v1260, 7
        %v1262 = vsub.s32 1, %v1261
        %v1263 = vrot.slane %v355, %v1262
        %v1264 = vlaneseq
        %v1265 = vshrl.u32 %v1264, 7
        %v1266 = vsub.s32 2, %v1265
        %v1267 = vrot.slane %v355, %v1266
        %v1268 = vlaneseq
        %v1269 = vshrl.u32 %v1268, 7
        %v1270 = vsub.s32 3, %v1269
        %v1271 = vrot.slane %v355, %v1270
        %v1272 = vlaneseq
        %v1273 = vshrl.u32 %v1272, 7
        %v1274 = vsub.s32 4, %v1273
        %v1275 = vrot.slane %v355, %v1274
        %v1276 = vlaneseq
        %v1277 = vshrl.u32 %v1276, 7
        %v1278 = vsub.s32 5, %v1277
        %v1279 = vrot.slane %v355, %v1278
        %v1280 = vlaneseq
        %v1281 = vshrl.u32 %v1280, 7
        %v1282 = vsub.s32 6, %v1281
        %v1283 = vrot.slane %v355, %v1282
        %v1284 = vlaneseq
        %v1285 = vshrl.u32 %v1284, 7
        %v1286 = vsub.s32 7, %v1285
        %v1287 = vrot.slane %v355, %v1286
        %v1288 = vlaneseq
        %v1289 = vshrl.u32 %v1288, 7
        %v1290 = vsub.s32 0, %v1289
        %v1291 = vrot.slane %v356, %v1290
        %v1292 = vlaneseq
        %v1293 = vshrl.u32 %v1292, 7
        %v1294 = vsub.s32 1, %v1293
        %v1295 = vrot.slane %v356, %v1294
        %v1296 = vlaneseq
        %v1297 = vshrl.u32 %v1296, 7
        %v1298 = vsub.s32 2, %v1297
        %v1299 = vrot.slane %v356, %v1298
        %v1300 = vlaneseq
        %v1301 = vshrl.u32 %v1300, 7
        %v1302 = vsub.s32 3, %v1301
        %v1303 = vrot.slane %v356, %v1302
        %v1304 = vlaneseq
        %v1305 = vshrl.u32 %v1304, 7
        %v1306 = vsub.s32 4, %v1305
        %v1307 = vrot.slane %v356, %v1306
        %v1308 = vlaneseq
        %v1309 = vshrl.u32 %v1308, 7
        %v1310 = vsub.s32 5, %v1309
        %v1311 = vrot.slane %v356, %v1310
        %v1312 = vlaneseq
        %v1313 = vshrl.u32 %v1312, 7
        %v1314 = vsub.s32 6, %v1313
        %v1315 = vrot.slane %v356, %v1314
        %v1316 = vlaneseq
        %v1317 = vshrl.u32 %v1316, 7
        %v1318 = vsub.s32 7, %v1317
        %v1319 = vrot.slane %v356, %v1318
        %v1320 = vlaneseq
        %v1321 = vshrl.u32 %v1320, 7
        %v1322 = vsub.s32 0, %v1321
        %v1323 = vrot.slane %v357, %v1322
        %v1324 = vlaneseq
        %v1325 = vshrl.u32 %v1324, 7
        %v1326 = vsub.s32 1, %v1325
        %v1327 = vrot.slane %v357, %v1326
        %v1328 = vlaneseq
        %v1329 = vshrl.u32 %v1328, 7
        %v1330 = vsub.s32 2, %v1329
        %v1331 = vrot.slane %v357, %v1330
        %v1332 = vlaneseq
        %v1333 = vshrl.u32 %v1332, 7
        %v1334 = vsub.s32 3, %v1333
        %v1335 = vrot.slane %v357, %v1334
        %v1336 = vlaneseq
        %v1337 = vshrl.u32 %v1336, 7
        %v1338 = vsub.s32 4, %v1337
        %v1339 = vrot.slane %v357, %v1338
        %v1340 = vlaneseq
        %v1341 = vshrl.u32 %v1340, 7
        %v1342 = vsub.s32 5, %v1341
        %v1343 = vrot.slane %v357, %v1342
        %v1344 = vlaneseq
        %v1345 = vshrl.u32 %v1344, 7
        %v1346 = vsub.s32 6, %v1345
        %v1347 = vrot.slane %v357, %v1346
        %v1348 = vlaneseq
        %v1349 = vshrl.u32 %v1348, 7
        %v1350 = vsub.s32 7, %v1349
        %v1351 = vrot.slane %v357, %v1350
        %v1352 = vlaneseq
        %v1353 = vshrl.u32 %v1352, 7
        %v1354 = vsub.s32 0, %v1353
        %v1355 = vrot.slane %v358, %v1354
        %v1356 = vlaneseq
        %v1357 = vshrl.u32 %v1356, 7
        %v1358 = vsub.s32 1, %v1357
        %v1359 = vrot.slane %v358, %v1358
        %v1360 = vlaneseq
        %v1361 = vshrl.u32 %v1360, 7
        %v1362 = vsub.s32 2, %v1361
        %v1363 = vrot.slane %v358, %v1362
        %v1364 = vlaneseq
        %v1365 = vshrl.u32 %v1364, 7
        %v1366 = vsub.s32 3, %v1365
        %v1367 = vrot.slane %v358, %v1366
        %v1368 = vlaneseq
        %v1369 = vshrl.u32 %v1368, 7
        %v1370 = vsub.s32 4, %v1369
        %v1371 = vrot.slane %v358, %v1370
        %v1372 = vlaneseq
        %v1373 = vshrl.u32 %v1372, 7
        %v1374 = vsub.s32 5, %v1373
        %v1375 = vrot.slane %v358, %v1374
        %v1376 = vlaneseq
        %v1377 = vshrl.u32 %v1376, 7
        %v1378 = vsub.s32 6, %v1377
        %v1379 = vrot.slane %v358, %v1378
        %v1380 = vlaneseq
        %v1381 = vshrl.u32 %v1380, 7
        %v1382 = vsub.s32 7, %v1381
        %v1383 = vrot.slane %v358, %v1382
        %v1384 = vlaneseq
        %v1385 = vshrl.u32 %v1384, 7
        %v1386 = vsub.s32 0, %v1385
        %v1387 = vrot.slane %v359, %v1386
        %v1388 = vlaneseq
        %v1389 = vshrl.u32 %v1388, 7
        %v1390 = vsub.s32 1, %v1389
        %v1391 = vrot.slane %v359, %v1390
        %v1392 = vlaneseq
        %v1393 = vshrl.u32 %v1392, 7
        %v1394 = vsub.s32 2, %v1393
        %v1395 = vrot.slane %v359, %v1394
        %v1396 = vlaneseq
        %v1397 = vshrl.u32 %v1396, 7
        %v1398 = vsub.s32 3, %v1397
        %v1399 = vrot.slane %v359, %v1398
        %v1400 = vlaneseq
        %v1401 = vshrl.u32 %v1400, 7
        %v1402 = vsub.s32 4, %v1401
        %v1403 = vrot.slane %v359, %v1402
        %v1404 = vlaneseq
        %v1405 = vshrl.u32 %v1404, 7
        %v1406 = vsub.s32 5, %v1405
        %v1407 = vrot.slane %v359, %v1406
        %v1408 = vlaneseq
        %v1409 = vshrl.u32 %v1408, 7
        %v1410 = vsub.s32 6, %v1409
        %v1411 = vrot.slane %v359, %v1410
        %v1412 = vlaneseq
        %v1413 = vshrl.u32 %v1412, 7
        %v1414 = vsub.s32 7, %v1413
        %v1415 = vrot.slane %v359, %v1414
        %v1416 = vcombine.low %v395, %v399
        %v1417 = vcombine.low %v403, %v407
        %v1418 = vcombine.low %v411, %v415
        %v1419 = vcombine.low %v419, %v423
        %v1421 = vunpack.c.l.s4 1966171168
        %v1422 = vunpack.c.0.s8 %v1421
        %v1423 = vlaneseq
        %v1424 = vshrl.u32 %v1423, 7
        %v1425 = vsub.s32 %v1422, %v1424
        %v1426 = vrot.slane %v1416, %v1425
        %v1428 = vunpack.c.l.s4 1966171168
        %v1429 = vunpack.c.0.s8 %v1428
        %v1430 = vlaneseq
        %v1431 = vshrl.u32 %v1430, 7
        %v1432 = vsub.s32 %v1429, %v1431
        %v1433 = vrot.slane %v1417, %v1432
        %v1435 = vunpack.c.l.s4 1966171168
        %v1436 = vunpack.c.0.s8 %v1435
        %v1437 = vlaneseq
        %v1438 = vshrl.u32 %v1437, 7
        %v1439 = vsub.s32 %v1436, %v1438
        %v1440 = vrot.slane %v1418, %v1439
        %v1442 = vunpack.c.l.s4 1966171168
        %v1443 = vunpack.c.0.s8 %v1442
        %v1444 = vlaneseq
        %v1445 = vshrl.u32 %v1444, 7
        %v1446 = vsub.s32 %v1443, %v1445
        %v1447 = vrot.slane %v1419, %v1446
        %v1448 = vcombine.low %v1426, %v1433
        %v1449 = vcombine.low %v1440, %v1447
        %v1451 = vunpack.c.l.s4 1966171168
        %v1452 = vunpack.c.0.s8 %v1451
        %v1453 = vlaneseq
        %v1454 = vshrl.u32 %v1453, 7
        %v1455 = vsub.s32 %v1452, %v1454
        %v1456 = vrot.slane %v1448, %v1455
        %v1458 = vunpack.c.l.s4 1966171168
        %v1459 = vunpack.c.0.s8 %v1458
        %v1460 = vlaneseq
        %v1461 = vshrl.u32 %v1460, 7
        %v1462 = vsub.s32 %v1459, %v1461
        %v1463 = vrot.slane %v1449, %v1462
        %v1464 = vcombine.low %v1456, %v1463
        %v1465 = vcombine.low %v427, %v431
        %v1466 = vcombine.low %v435, %v439
        %v1467 = vcombine.low %v443, %v447
        %v1468 = vcombine.low %v451, %v455
        %v1470 = vunpack.c.l.s4 1966171168
        %v1471 = vunpack.c.0.s8 %v1470
        %v1472 = vlaneseq
        %v1473 = vshrl.u32 %v1472, 7
        %v1474 = vsub.s32 %v1471, %v1473
        %v1475 = vrot.slane %v1465, %v1474
        %v1477 = vunpack.c.l.s4 1966171168
        %v1478 = vunpack.c.0.s8 %v1477
        %v1479 = vlaneseq
        %v1480 = vshrl.u32 %v1479, 7
        %v1481 = vsub.s32 %v1478, %v1480
        %v1482 = vrot.slane %v1466, %v1481
        %v1484 = vunpack.c.l.s4 1966171168
        %v1485 = vunpack.c.0.s8 %v1484
        %v1486 = vlaneseq
        %v1487 = vshrl.u32 %v1486, 7
        %v1488 = vsub.s32 %v1485, %v1487
        %v1489 = vrot.slane %v1467, %v1488
        %v1491 = vunpack.c.l.s4 1966171168
        %v1492 = vunpack.c.0.s8 %v1491
        %v1493 = vlaneseq
        %v1494 = vshrl.u32 %v1493, 7
        %v1495 = vsub.s32 %v1492, %v1494
        %v1496 = vrot.slane %v1468, %v1495
        %v1497 = vcombine.low %v1475, %v1482
        %v1498 = vcombine.low %v1489, %v1496
        %v1500 = vunpack.c.l.s4 1966171168
        %v1501 = vunpack.c.0.s8 %v1500
        %v1502 = vlaneseq
        %v1503 = vshrl.u32 %v1502, 7
        %v1504 = vsub.s32 %v1501, %v1503
        %v1505 = vrot.slane %v1497, %v1504
        %v1507 = vunpack.c.l.s4 1966171168
        %v1508 = vunpack.c.0.s8 %v1507
        %v1509 = vlaneseq
        %v1510 = vshrl.u32 %v1509, 7
        %v1511 = vsub.s32 %v1508, %v1510
        %v1512 = vrot.slane %v1498, %v1511
        %v1513 = vcombine.low %v1505, %v1512
        %v1514 = vcombine.low %v459, %v463
        %v1515 = vcombine.low %v467, %v471
        %v1516 = vcombine.low %v475, %v479
        %v1517 = vcombine.low %v483, %v487
        %v1519 = vunpack.c.l.s4 1966171168
        %v1520 = vunpack.c.0.s8 %v1519
        %v1521 = vlaneseq
        %v1522 = vshrl.u32 %v1521, 7
        %v1523 = vsub.s32 %v1520, %v1522
        %v1524 = vrot.slane %v1514, %v1523
        %v1526 = vunpack.c.l.s4 1966171168
        %v1527 = vunpack.c.0.s8 %v1526
        %v1528 = vlaneseq
        %v1529 = vshrl.u32 %v1528, 7
        %v1530 = vsub.s32 %v1527, %v1529
        %v1531 = vrot.slane %v1515, %v1530
        %v1533 = vunpack.c.l.s4 1966171168
        %v1534 = vunpack.c.0.s8 %v1533
        %v1535 = vlaneseq
        %v1536 = vshrl.u32 %v1535, 7
        %v1537 = vsub.s32 %v1534, %v1536
        %v1538 = vrot.slane %v1516, %v1537
        %v1540 = vunpack.c.l.s4 1966171168
        %v1541 = vunpack.c.0.s8 %v1540
        %v1542 = vlaneseq
        %v1543 = vshrl.u32 %v1542, 7
        %v1544 = vsub.s32 %v1541, %v1543
        %v1545 = vrot.slane %v1517, %v1544
        %v1546 = vcombine.low %v1524, %v1531
        %v1547 = vcombine.low %v1538, %v1545
        %v1549 = vunpack.c.l.s4 1966171168
        %v1550 = vunpack.c.0.s8 %v1549
        %v1551 = vlaneseq
        %v1552 = vshrl.u32 %v1551, 7
        %v1553 = vsub.s32 %v1550, %v1552
        %v1554 = vrot.slane %v1546, %v1553
        %v1556 = vunpack.c.l.s4 1966171168
        %v1557 = vunpack.c.0.s8 %v1556
        %v1558 = vlaneseq
        %v1559 = vshrl.u32 %v1558, 7
        %v1560 = vsub.s32 %v1557, %v1559
        %v1561 = vrot.slane %v1547, %v1560
        %v1562 = vcombine.low %v1554, %v1561
        %v1563 = vcombine.low %v491, %v495
        %v1564 = vcombine.low %v499, %v503
        %v1565 = vcombine.low %v507, %v511
        %v1566 = vcombine.low %v515, %v519
        %v1568 = vunpack.c.l.s4 1966171168
        %v1569 = vunpack.c.0.s8 %v1568
        %v1570 = vlaneseq
        %v1571 = vshrl.u32 %v1570, 7
        %v1572 = vsub.s32 %v1569, %v1571
        %v1573 = vrot.slane %v1563, %v1572
        %v1575 = vunpack.c.l.s4 1966171168
        %v1576 = vunpack.c.0.s8 %v1575
        %v1577 = vlaneseq
        %v1578 = vshrl.u32 %v1577, 7
        %v1579 = vsub.s32 %v1576, %v1578
        %v1580 = vrot.slane %v1564, %v1579
        %v1582 = vunpack.c.l.s4 1966171168
        %v1583 = vunpack.c.0.s8 %v1582
        %v1584 = vlaneseq
        %v1585 = vshrl.u32 %v1584, 7
        %v1586 = vsub.s32 %v1583, %v1585
        %v1587 = vrot.slane %v1565, %v1586
        %v1589 = vunpack.c.l.s4 1966171168
        %v1590 = vunpack.c.0.s8 %v1589
        %v1591 = vlaneseq
        %v1592 = vshrl.u32 %v1591, 7
        %v1593 = vsub.s32 %v1590, %v1592
        %v1594 = vrot.slane %v1566, %v1593
        %v1595 = vcombine.low %v1573, %v1580
        %v1596 = vcombine.low %v1587, %v1594
        %v1598 = vunpack.c.l.s4 1966171168
        %v1599 = vunpack.c.0.s8 %v1598
        %v1600 = vlaneseq
        %v1601 = vshrl.u32 %v1600, 7
        %v1602 = vsub.s32 %v1599, %v1601
        %v1603 = vrot.slane %v1595, %v1602
        %v1605 = vunpack.c.l.s4 1966171168
        %v1606 = vunpack.c.0.s8 %v1605
        %v1607 = vlaneseq
        %v1608 = vshrl.u32 %v1607, 7
        %v1609 = vsub.s32 %v1606, %v1608
        %v1610 = vrot.slane %v1596, %v1609
        %v1611 = vcombine.low %v1603, %v1610
        %v1612 = vcombine.low %v523, %v527
        %v1613 = vcombine.low %v531, %v535
        %v1614 = vcombine.low %v539, %v543
        %v1615 = vcombine.low %v547, %v551
        %v1617 = vunpack.c.l.s4 1966171168
        %v1618 = vunpack.c.0.s8 %v1617
        %v1619 = vlaneseq
        %v1620 = vshrl.u32 %v1619, 7
        %v1621 = vsub.s32 %v1618, %v1620
        %v1622 = vrot.slane %v1612, %v1621
        %v1624 = vunpack.c.l.s4 1966171168
        %v1625 = vunpack.c.0.s8 %v1624
        %v1626 = vlaneseq
        %v1627 = vshrl.u32 %v1626, 7
        %v1628 = vsub.s32 %v1625, %v1627
        %v1629 = vrot.slane %v1613, %v1628
        %v1631 = vunpack.c.l.s4 1966171168
        %v1632 = vunpack.c.0.s8 %v1631
        %v1633 = vlaneseq
        %v1634 = vshrl.u32 %v1633, 7
        %v1635 = vsub.s32 %v1632, %v1634
        %v1636 = vrot.slane %v1614, %v1635
        %v1638 = vunpack.c.l.s4 1966171168
        %v1639 = vunpack.c.0.s8 %v1638
        %v1640 = vlaneseq
        %v1641 = vshrl.u32 %v1640, 7
        %v1642 = vsub.s32 %v1639, %v1641
        %v1643 = vrot.slane %v1615, %v1642
        %v1644 = vcombine.low %v1622, %v1629
        %v1645 = vcombine.low %v1636, %v1643
        %v1647 = vunpack.c.l.s4 1966171168
        %v1648 = vunpack.c.0.s8 %v1647
        %v1649 = vlaneseq
        %v1650 = vshrl.u32 %v1649, 7
        %v1651 = vsub.s32 %v1648, %v1650
        %v1652 = vrot.slane %v1644, %v1651
        %v1654 = vunpack.c.l.s4 1966171168
        %v1655 = vunpack.c.0.s8 %v1654
        %v1656 = vlaneseq
        %v1657 = vshrl.u32 %v1656, 7
        %v1658 = vsub.s32 %v1655, %v1657
        %v1659 = vrot.slane %v1645, %v1658
        %v1660 = vcombine.low %v1652, %v1659
        %v1661 = vcombine.low %v555, %v559
        %v1662 = vcombine.low %v563, %v567
        %v1663 = vcombine.low %v571, %v575
        %v1664 = vcombine.low %v579, %v583
        %v1666 = vunpack.c.l.s4 1966171168
        %v1667 = vunpack.c.0.s8 %v1666
        %v1668 = vlaneseq
        %v1669 = vshrl.u32 %v1668, 7
        %v1670 = vsub.s32 %v1667, %v1669
        %v1671 = vrot.slane %v1661, %v1670
        %v1673 = vunpack.c.l.s4 1966171168
        %v1674 = vunpack.c.0.s8 %v1673
        %v1675 = vlaneseq
        %v1676 = vshrl.u32 %v1675, 7
        %v1677 = vsub.s32 %v1674, %v1676
        %v1678 = vrot.slane %v1662, %v1677
        %v1680 = vunpack.c.l.s4 1966171168
        %v1681 = vunpack.c.0.s8 %v1680
        %v1682 = vlaneseq
        %v1683 = vshrl.u32 %v1682, 7
        %v1684 = vsub.s32 %v1681, %v1683
        %v1685 = vrot.slane %v1663, %v1684
        %v1687 = vunpack.c.l.s4 1966171168
        %v1688 = vunpack.c.0.s8 %v1687
        %v1689 = vlaneseq
        %v1690 = vshrl.u32 %v1689, 7
        %v1691 = vsub.s32 %v1688, %v1690
        %v1692 = vrot.slane %v1664, %v1691
        %v1693 = vcombine.low %v1671, %v1678
        %v1694 = vcombine.low %v1685, %v1692
        %v1696 = vunpack.c.l.s4 1966171168
        %v1697 = vunpack.c.0.s8 %v1696
        %v1698 = vlaneseq
        %v1699 = vshrl.u32 %v1698, 7
        %v1700 = vsub.s32 %v1697, %v1699
        %v1701 = vrot.slane %v1693, %v1700
        %v1703 = vunpack.c.l.s4 1966171168
        %v1704 = vunpack.c.0.s8 %v1703
        %v1705 = vlaneseq
        %v1706 = vshrl.u32 %v1705, 7
        %v1707 = vsub.s32 %v1704, %v1706
        %v1708 = vrot.slane %v1694, %v1707
        %v1709 = vcombine.low %v1701, %v1708
        %v1710 = vcombine.low %v587, %v591
        %v1711 = vcombine.low %v595, %v599
        %v1712 = vcombine.low %v603, %v607
        %v1713 = vcombine.low %v611, %v615
        %v1715 = vunpack.c.l.s4 1966171168
        %v1716 = vunpack.c.0.s8 %v1715
        %v1717 = vlaneseq
        %v1718 = vshrl.u32 %v1717, 7
        %v1719 = vsub.s32 %v1716, %v1718
        %v1720 = vrot.slane %v1710, %v1719
        %v1722 = vunpack.c.l.s4 1966171168
        %v1723 = vunpack.c.0.s8 %v1722
        %v1724 = vlaneseq
        %v1725 = vshrl.u32 %v1724, 7
        %v1726 = vsub.s32 %v1723, %v1725
        %v1727 = vrot.slane %v1711, %v1726
        %v1729 = vunpack.c.l.s4 1966171168
        %v1730 = vunpack.c.0.s8 %v1729
        %v1731 = vlaneseq
        %v1732 = vshrl.u32 %v1731, 7
        %v1733 = vsub.s32 %v1730, %v1732
        %v1734 = vrot.slane %v1712, %v1733
        %v1736 = vunpack.c.l.s4 1966171168
        %v1737 = vunpack.c.0.s8 %v1736
        %v1738 = vlaneseq
        %v1739 = vshrl.u32 %v1738, 7
        %v1740 = vsub.s32 %v1737, %v1739
        %v1741 = vrot.slane %v1713, %v1740
        %v1742 = vcombine.low %v1720, %v1727
        %v1743 = vcombine.low %v1734, %v1741
        %v1745 = vunpack.c.l.s4 1966171168
        %v1746 = vunpack.c.0.s8 %v1745
        %v1747 = vlaneseq
        %v1748 = vshrl.u32 %v1747, 7
        %v1749 = vsub.s32 %v1746, %v1748
        %v1750 = vrot.slane %v1742, %v1749
        %v1752 = vunpack.c.l.s4 1966171168
        %v1753 = vunpack.c.0.s8 %v1752
        %v1754 = vlaneseq
        %v1755 = vshrl.u32 %v1754, 7
        %v1756 = vsub.s32 %v1753, %v1755
        %v1757 = vrot.slane %v1743, %v1756
        %v1758 = vcombine.low %v1750, %v1757
        %v1759 = vcombine.low %v619, %v623
        %v1760 = vcombine.low %v627, %v631
        %v1761 = vcombine.low %v635, %v639
        %v1762 = vcombine.low %v643, %v647
        %v1764 = vunpack.c.l.s4 1966171168
        %v1765 = vunpack.c.0.s8 %v1764
        %v1766 = vlaneseq
        %v1767 = vshrl.u32 %v1766, 7
        %v1768 = vsub.s32 %v1765, %v1767
        %v1769 = vrot.slane %v1759, %v1768
        %v1771 = vunpack.c.l.s4 1966171168
        %v1772 = vunpack.c.0.s8 %v1771
        %v1773 = vlaneseq
        %v1774 = vshrl.u32 %v1773, 7
        %v1775 = vsub.s32 %v1772, %v1774
        %v1776 = vrot.slane %v1760, %v1775
        %v1778 = vunpack.c.l.s4 1966171168
        %v1779 = vunpack.c.0.s8 %v1778
        %v1780 = vlaneseq
        %v1781 = vshrl.u32 %v1780, 7
        %v1782 = vsub.s32 %v1779, %v1781
        %v1783 = vrot.slane %v1761, %v1782
        %v1785 = vunpack.c.l.s4 1966171168
        %v1786 = vunpack.c.0.s8 %v1785
        %v1787 = vlaneseq
        %v1788 = vshrl.u32 %v1787, 7
        %v1789 = vsub.s32 %v1786, %v1788
        %v1790 = vrot.slane %v1762, %v1789
        %v1791 = vcombine.low %v1769, %v1776
        %v1792 = vcombine.low %v1783, %v1790
        %v1794 = vunpack.c.l.s4 1966171168
        %v1795 = vunpack.c.0.s8 %v1794
        %v1796 = vlaneseq
        %v1797 = vshrl.u32 %v1796, 7
        %v1798 = vsub.s32 %v1795, %v1797
        %v1799 = vrot.slane %v1791, %v1798
        %v1801 = vunpack.c.l.s4 1966171168
        %v1802 = vunpack.c.0.s8 %v1801
        %v1803 = vlaneseq
        %v1804 = vshrl.u32 %v1803, 7
        %v1805 = vsub.s32 %v1802, %v1804
        %v1806 = vrot.slane %v1792, %v1805
        %v1807 = vcombine.low %v1799, %v1806
        %v1808 = vcombine.low %v651, %v655
        %v1809 = vcombine.low %v659, %v663
        %v1810 = vcombine.low %v667, %v671
        %v1811 = vcombine.low %v675, %v679
        %v1813 = vunpack.c.l.s4 1966171168
        %v1814 = vunpack.c.0.s8 %v1813
        %v1815 = vlaneseq
        %v1816 = vshrl.u32 %v1815, 7
        %v1817 = vsub.s32 %v1814, %v1816
        %v1818 = vrot.slane %v1808, %v1817
        %v1820 = vunpack.c.l.s4 1966171168
        %v1821 = vunpack.c.0.s8 %v1820
        %v1822 = vlaneseq
        %v1823 = vshrl.u32 %v1822, 7
        %v1824 = vsub.s32 %v1821, %v1823
        %v1825 = vrot.slane %v1809, %v1824
        %v1827 = vunpack.c.l.s4 1966171168
        %v1828 = vunpack.c.0.s8 %v1827
        %v1829 = vlaneseq
        %v1830 = vshrl.u32 %v1829, 7
        %v1831 = vsub.s32 %v1828, %v1830
        %v1832 = vrot.slane %v1810, %v1831
        %v1834 = vunpack.c.l.s4 1966171168
        %v1835 = vunpack.c.0.s8 %v1834
        %v1836 = vlaneseq
        %v1837 = vshrl.u32 %v1836, 7
        %v1838 = vsub.s32 %v1835, %v1837
        %v1839 = vrot.slane %v1811, %v1838
        %v1840 = vcombine.low %v1818, %v1825
        %v1841 = vcombine.low %v1832, %v1839
        %v1843 = vunpack.c.l.s4 1966171168
        %v1844 = vunpack.c.0.s8 %v1843
        %v1845 = vlaneseq
        %v1846 = vshrl.u32 %v1845, 7
        %v1847 = vsub.s32 %v1844, %v1846
        %v1848 = vrot.slane %v1840, %v1847
        %v1850 = vunpack.c.l.s4 1966171168
        %v1851 = vunpack.c.0.s8 %v1850
        %v1852 = vlaneseq
        %v1853 = vshrl.u32 %v1852, 7
        %v1854 = vsub.s32 %v1851, %v1853
        %v1855 = vrot.slane %v1841, %v1854
        %v1856 = vcombine.low %v1848, %v1855
        %v1857 = vcombine.low %v683, %v687
        %v1858 = vcombine.low %v691, %v695
        %v1859 = vcombine.low %v699, %v703
        %v1860 = vcombine.low %v707, %v711
        %v1862 = vunpack.c.l.s4 1966171168
        %v1863 = vunpack.c.0.s8 %v1862
        %v1864 = vlaneseq
        %v1865 = vshrl.u32 %v1864, 7
        %v1866 = vsub.s32 %v1863, %v1865
        %v1867 = vrot.slane %v1857, %v1866
        %v1869 = vunpack.c.l.s4 1966171168
        %v1870 = vunpack.c.0.s8 %v1869
        %v1871 = vlaneseq
        %v1872 = vshrl.u32 %v1871, 7
        %v1873 = vsub.s32 %v1870, %v1872
        %v1874 = vrot.slane %v1858, %v1873
        %v1876 = vunpack.c.l.s4 1966171168
        %v1877 = vunpack.c.0.s8 %v1876
        %v1878 = vlaneseq
        %v1879 = vshrl.u32 %v1878, 7
        %v1880 = vsub.s32 %v1877, %v1879
        %v1881 = vrot.slane %v1859, %v1880
        %v1883 = vunpack.c.l.s4 1966171168
        %v1884 = vunpack.c.0.s8 %v1883
        %v1885 = vlaneseq
        %v1886 = vshrl.u32 %v1885, 7
        %v1887 = vsub.s32 %v1884, %v1886
        %v1888 = vrot.slane %v1860, %v1887
        %v1889 = vcombine.low %v1867, %v1874
        %v1890 = vcombine.low %v1881, %v1888
        %v1892 = vunpack.c.l.s4 1966171168
        %v1893 = vunpack.c.0.s8 %v1892
        %v1894 = vlaneseq
        %v1895 = vshrl.u32 %v1894, 7
        %v1896 = vsub.s32 %v1893, %v1895
        %v1897 = vrot.slane %v1889, %v1896
        %v1899 = vunpack.c.l.s4 1966171168
        %v1900 = vunpack.c.0.s8 %v1899
        %v1901 = vlaneseq
        %v1902 = vshrl.u32 %v1901, 7
        %v1903 = vsub.s32 %v1900, %v1902
        %v1904 = vrot.slane %v1890, %v1903
        %v1905 = vcombine.low %v1897, %v1904
        %v1906 = vcombine.low %v715, %v719
        %v1907 = vcombine.low %v723, %v727
        %v1908 = vcombine.low %v731, %v735
        %v1909 = vcombine.low %v739, %v743
        %v1911 = vunpack.c.l.s4 1966171168
        %v1912 = vunpack.c.0.s8 %v1911
        %v1913 = vlaneseq
        %v1914 = vshrl.u32 %v1913, 7
        %v1915 = vsub.s32 %v1912, %v1914
        %v1916 = vrot.slane %v1906, %v1915
        %v1918 = vunpack.c.l.s4 1966171168
        %v1919 = vunpack.c.0.s8 %v1918
        %v1920 = vlaneseq
        %v1921 = vshrl.u32 %v1920, 7
        %v1922 = vsub.s32 %v1919, %v1921
        %v1923 = vrot.slane %v1907, %v1922
        %v1925 = vunpack.c.l.s4 1966171168
        %v1926 = vunpack.c.0.s8 %v1925
        %v1927 = vlaneseq
        %v1928 = vshrl.u32 %v1927, 7
        %v1929 = vsub.s32 %v1926, %v1928
        %v1930 = vrot.slane %v1908, %v1929
        %v1932 = vunpack.c.l.s4 1966171168
        %v1933 = vunpack.c.0.s8 %v1932
        %v1934 = vlaneseq
        %v1935 = vshrl.u32 %v1934, 7
        %v1936 = vsub.s32 %v1933, %v1935
        %v1937 = vrot.slane %v1909, %v1936
        %v1938 = vcombine.low %v1916, %v1923
        %v1939 = vcombine.low %v1930, %v1937
        %v1941 = vunpack.c.l.s4 1966171168
        %v1942 = vunpack.c.0.s8 %v1941
        %v1943 = vlaneseq
        %v1944 = vshrl.u32 %v1943, 7
        %v1945 = vsub.s32 %v1942, %v1944
        %v1946 = vrot.slane %v1938, %v1945
        %v1948 = vunpack.c.l.s4 1966171168
        %v1949 = vunpack.c.0.s8 %v1948
        %v1950 = vlaneseq
        %v1951 = vshrl.u32 %v1950, 7
        %v1952 = vsub.s32 %v1949, %v1951
        %v1953 = vrot.slane %v1939, %v1952
        %v1954 = vcombine.low %v1946, %v1953
        %v1955 = vcombine.low %v747, %v751
        %v1956 = vcombine.low %v755, %v759
        %v1957 = vcombine.low %v763, %v767
        %v1958 = vcombine.low %v771, %v775
        %v1960 = vunpack.c.l.s4 1966171168
        %v1961 = vunpack.c.0.s8 %v1960
        %v1962 = vlaneseq
        %v1963 = vshrl.u32 %v1962, 7
        %v1964 = vsub.s32 %v1961, %v1963
        %v1965 = vrot.slane %v1955, %v1964
        %v1967 = vunpack.c.l.s4 1966171168
        %v1968 = vunpack.c.0.s8 %v1967
        %v1969 = vlaneseq
        %v1970 = vshrl.u32 %v1969, 7
        %v1971 = vsub.s32 %v1968, %v1970
        %v1972 = vrot.slane %v1956, %v1971
        %v1974 = vunpack.c.l.s4 1966171168
        %v1975 = vunpack.c.0.s8 %v1974
        %v1976 = vlaneseq
        %v1977 = vshrl.u32 %v1976, 7
        %v1978 = vsub.s32 %v1975, %v1977
        %v1979 = vrot.slane %v1957, %v1978
        %v1981 = vunpack.c.l.s4 1966171168
        %v1982 = vunpack.c.0.s8 %v1981
        %v1983 = vlaneseq
        %v1984 = vshrl.u32 %v1983, 7
        %v1985 = vsub.s32 %v1982, %v1984
        %v1986 = vrot.slane %v1958, %v1985
        %v1987 = vcombine.low %v1965, %v1972
        %v1988 = vcombine.low %v1979, %v1986
        %v1990 = vunpack.c.l.s4 1966171168
        %v1991 = vunpack.c.0.s8 %v1990
        %v1992 = vlaneseq
        %v1993 = vshrl.u32 %v1992, 7
        %v1994 = vsub.s32 %v1991, %v1993
        %v1995 = vrot.slane %v1987, %v1994
        %v1997 = vunpack.c.l.s4 1966171168
        %v1998 = vunpack.c.0.s8 %v1997
        %v1999 = vlaneseq
        %v2000 = vshrl.u32 %v1999, 7
        %v2001 = vsub.s32 %v1998, %v2000
        %v2002 = vrot.slane %v1988, %v2001
        %v2003 = vcombine.low %v1995, %v2002
        %v2004 = vcombine.low %v779, %v783
        %v2005 = vcombine.low %v787, %v791
        %v2006 = vcombine.low %v795, %v799
        %v2007 = vcombine.low %v803, %v807
        %v2009 = vunpack.c.l.s4 1966171168
        %v2010 = vunpack.c.0.s8 %v2009
        %v2011 = vlaneseq
        %v2012 = vshrl.u32 %v2011, 7
        %v2013 = vsub.s32 %v2010, %v2012
        %v2014 = vrot.slane %v2004, %v2013
        %v2016 = vunpack.c.l.s4 1966171168
        %v2017 = vunpack.c.0.s8 %v2016
        %v2018 = vlaneseq
        %v2019 = vshrl.u32 %v2018, 7
        %v2020 = vsub.s32 %v2017, %v2019
        %v2021 = vrot.slane %v2005, %v2020
        %v2023 = vunpack.c.l.s4 1966171168
        %v2024 = vunpack.c.0.s8 %v2023
        %v2025 = vlaneseq
        %v2026 = vshrl.u32 %v2025, 7
        %v2027 = vsub.s32 %v2024, %v2026
        %v2028 = vrot.slane %v2006, %v2027
        %v2030 = vunpack.c.l.s4 1966171168
        %v2031 = vunpack.c.0.s8 %v2030
        %v2032 = vlaneseq
        %v2033 = vshrl.u32 %v2032, 7
        %v2034 = vsub.s32 %v2031, %v2033
        %v2035 = vrot.slane %v2007, %v2034
        %v2036 = vcombine.low %v2014, %v2021
        %v2037 = vcombine.low %v2028, %v2035
        %v2039 = vunpack.c.l.s4 1966171168
        %v2040 = vunpack.c.0.s8 %v2039
        %v2041 = vlaneseq
        %v2042 = vshrl.u32 %v2041, 7
        %v2043 = vsub.s32 %v2040, %v2042
        %v2044 = vrot.slane %v2036, %v2043
        %v2046 = vunpack.c.l.s4 1966171168
        %v2047 = vunpack.c.0.s8 %v2046
        %v2048 = vlaneseq
        %v2049 = vshrl.u32 %v2048, 7
        %v2050 = vsub.s32 %v2047, %v2049
        %v2051 = vrot.slane %v2037, %v2050
        %v2052 = vcombine.low %v2044, %v2051
        %v2053 = vcombine.low %v811, %v815
        %v2054 = vcombine.low %v819, %v823
        %v2055 = vcombine.low %v827, %v831
        %v2056 = vcombine.low %v835, %v839
        %v2058 = vunpack.c.l.s4 1966171168
        %v2059 = vunpack.c.0.s8 %v2058
        %v2060 = vlaneseq
        %v2061 = vshrl.u32 %v2060, 7
        %v2062 = vsub.s32 %v2059, %v2061
        %v2063 = vrot.slane %v2053, %v2062
        %v2065 = vunpack.c.l.s4 1966171168
        %v2066 = vunpack.c.0.s8 %v2065
        %v2067 = vlaneseq
        %v2068 = vshrl.u32 %v2067, 7
        %v2069 = vsub.s32 %v2066, %v2068
        %v2070 = vrot.slane %v2054, %v2069
        %v2072 = vunpack.c.l.s4 1966171168
        %v2073 = vunpack.c.0.s8 %v2072
        %v2074 = vlaneseq
        %v2075 = vshrl.u32 %v2074, 7
        %v2076 = vsub.s32 %v2073, %v2075
        %v2077 = vrot.slane %v2055, %v2076
        %v2079 = vunpack.c.l.s4 1966171168
        %v2080 = vunpack.c.0.s8 %v2079
        %v2081 = vlaneseq
        %v2082 = vshrl.u32 %v2081, 7
        %v2083 = vsub.s32 %v2080, %v2082
        %v2084 = vrot.slane %v2056, %v2083
        %v2085 = vcombine.low %v2063, %v2070
        %v2086 = vcombine.low %v2077, %v2084
        %v2088 = vunpack.c.l.s4 1966171168
        %v2089 = vunpack.c.0.s8 %v2088
        %v2090 = vlaneseq
        %v2091 = vshrl.u32 %v2090, 7
        %v2092 = vsub.s32 %v2089, %v2091
        %v2093 = vrot.slane %v2085, %v2092
        %v2095 = vunpack.c.l.s4 1966171168
        %v2096 = vunpack.c.0.s8 %v2095
        %v2097 = vlaneseq
        %v2098 = vshrl.u32 %v2097, 7
        %v2099 = vsub.s32 %v2096, %v2098
        %v2100 = vrot.slane %v2086, %v2099
        %v2101 = vcombine.low %v2093, %v2100
        %v2102 = vcombine.low %v843, %v847
        %v2103 = vcombine.low %v851, %v855
        %v2104 = vcombine.low %v859, %v863
        %v2105 = vcombine.low %v867, %v871
        %v2107 = vunpack.c.l.s4 1966171168
        %v2108 = vunpack.c.0.s8 %v2107
        %v2109 = vlaneseq
        %v2110 = vshrl.u32 %v2109, 7
        %v2111 = vsub.s32 %v2108, %v2110
        %v2112 = vrot.slane %v2102, %v2111
        %v2114 = vunpack.c.l.s4 1966171168
        %v2115 = vunpack.c.0.s8 %v2114
        %v2116 = vlaneseq
        %v2117 = vshrl.u32 %v2116, 7
        %v2118 = vsub.s32 %v2115, %v2117
        %v2119 = vrot.slane %v2103, %v2118
        %v2121 = vunpack.c.l.s4 1966171168
        %v2122 = vunpack.c.0.s8 %v2121
        %v2123 = vlaneseq
        %v2124 = vshrl.u32 %v2123, 7
        %v2125 = vsub.s32 %v2122, %v2124
        %v2126 = vrot.slane %v2104, %v2125
        %v2128 = vunpack.c.l.s4 1966171168
        %v2129 = vunpack.c.0.s8 %v2128
        %v2130 = vlaneseq
        %v2131 = vshrl.u32 %v2130, 7
        %v2132 = vsub.s32 %v2129, %v2131
        %v2133 = vrot.slane %v2105, %v2132
        %v2134 = vcombine.low %v2112, %v2119
        %v2135 = vcombine.low %v2126, %v2133
        %v2137 = vunpack.c.l.s4 1966171168
        %v2138 = vunpack.c.0.s8 %v2137
        %v2139 = vlaneseq
        %v2140 = vshrl.u32 %v2139, 7
        %v2141 = vsub.s32 %v2138, %v2140
        %v2142 = vrot.slane %v2134, %v2141
        %v2144 = vunpack.c.l.s4 1966171168
        %v2145 = vunpack.c.0.s8 %v2144
        %v2146 = vlaneseq
        %v2147 = vshrl.u32 %v2146, 7
        %v2148 = vsub.s32 %v2145, %v2147
        %v2149 = vrot.slane %v2135, %v2148
        %v2150 = vcombine.low %v2142, %v2149
        %v2151 = vcombine.low %v875, %v879
        %v2152 = vcombine.low %v883, %v887
        %v2153 = vcombine.low %v891, %v895
        %v2154 = vcombine.low %v899, %v903
        %v2156 = vunpack.c.l.s4 1966171168
        %v2157 = vunpack.c.0.s8 %v2156
        %v2158 = vlaneseq
        %v2159 = vshrl.u32 %v2158, 7
        %v2160 = vsub.s32 %v2157, %v2159
        %v2161 = vrot.slane %v2151, %v2160
        %v2163 = vunpack.c.l.s4 1966171168
        %v2164 = vunpack.c.0.s8 %v2163
        %v2165 = vlaneseq
        %v2166 = vshrl.u32 %v2165, 7
        %v2167 = vsub.s32 %v2164, %v2166
        %v2168 = vrot.slane %v2152, %v2167
        %v2170 = vunpack.c.l.s4 1966171168
        %v2171 = vunpack.c.0.s8 %v2170
        %v2172 = vlaneseq
        %v2173 = vshrl.u32 %v2172, 7
        %v2174 = vsub.s32 %v2171, %v2173
        %v2175 = vrot.slane %v2153, %v2174
        %v2177 = vunpack.c.l.s4 1966171168
        %v2178 = vunpack.c.0.s8 %v2177
        %v2179 = vlaneseq
        %v2180 = vshrl.u32 %v2179, 7
        %v2181 = vsub.s32 %v2178, %v2180
        %v2182 = vrot.slane %v2154, %v2181
        %v2183 = vcombine.low %v2161, %v2168
        %v2184 = vcombine.low %v2175, %v2182
        %v2186 = vunpack.c.l.s4 1966171168
        %v2187 = vunpack.c.0.s8 %v2186
        %v2188 = vlaneseq
        %v2189 = vshrl.u32 %v2188, 7
        %v2190 = vsub.s32 %v2187, %v2189
        %v2191 = vrot.slane %v2183, %v2190
        %v2193 = vunpack.c.l.s4 1966171168
        %v2194 = vunpack.c.0.s8 %v2193
        %v2195 = vlaneseq
        %v2196 = vshrl.u32 %v2195, 7
        %v2197 = vsub.s32 %v2194, %v2196
        %v2198 = vrot.slane %v2184, %v2197
        %v2199 = vcombine.low %v2191, %v2198
        %v2200 = vcombine.low %v907, %v911
        %v2201 = vcombine.low %v915, %v919
        %v2202 = vcombine.low %v923, %v927
        %v2203 = vcombine.low %v931, %v935
        %v2205 = vunpack.c.l.s4 1966171168
        %v2206 = vunpack.c.0.s8 %v2205
        %v2207 = vlaneseq
        %v2208 = vshrl.u32 %v2207, 7
        %v2209 = vsub.s32 %v2206, %v2208
        %v2210 = vrot.slane %v2200, %v2209
        %v2212 = vunpack.c.l.s4 1966171168
        %v2213 = vunpack.c.0.s8 %v2212
        %v2214 = vlaneseq
        %v2215 = vshrl.u32 %v2214, 7
        %v2216 = vsub.s32 %v2213, %v2215
        %v2217 = vrot.slane %v2201, %v2216
        %v2219 = vunpack.c.l.s4 1966171168
        %v2220 = vunpack.c.0.s8 %v2219
        %v2221 = vlaneseq
        %v2222 = vshrl.u32 %v2221, 7
        %v2223 = vsub.s32 %v2220, %v2222
        %v2224 = vrot.slane %v2202, %v2223
        %v2226 = vunpack.c.l.s4 1966171168
        %v2227 = vunpack.c.0.s8 %v2226
        %v2228 = vlaneseq
        %v2229 = vshrl.u32 %v2228, 7
        %v2230 = vsub.s32 %v2227, %v2229
        %v2231 = vrot.slane %v2203, %v2230
        %v2232 = vcombine.low %v2210, %v2217
        %v2233 = vcombine.low %v2224, %v2231
        %v2235 = vunpack.c.l.s4 1966171168
        %v2236 = vunpack.c.0.s8 %v2235
        %v2237 = vlaneseq
        %v2238 = vshrl.u32 %v2237, 7
        %v2239 = vsub.s32 %v2236, %v2238
        %v2240 = vrot.slane %v2232, %v2239
        %v2242 = vunpack.c.l.s4 1966171168
        %v2243 = vunpack.c.0.s8 %v2242
        %v2244 = vlaneseq
        %v2245 = vshrl.u32 %v2244, 7
        %v2246 = vsub.s32 %v2243, %v2245
        %v2247 = vrot.slane %v2233, %v2246
        %v2248 = vcombine.low %v2240, %v2247
        %v2249 = vcombine.low %v939, %v943
        %v2250 = vcombine.low %v947, %v951
        %v2251 = vcombine.low %v955, %v959
        %v2252 = vcombine.low %v963, %v967
        %v2254 = vunpack.c.l.s4 1966171168
        %v2255 = vunpack.c.0.s8 %v2254
        %v2256 = vlaneseq
        %v2257 = vshrl.u32 %v2256, 7
        %v2258 = vsub.s32 %v2255, %v2257
        %v2259 = vrot.slane %v2249, %v2258
        %v2261 = vunpack.c.l.s4 1966171168
        %v2262 = vunpack.c.0.s8 %v2261
        %v2263 = vlaneseq
        %v2264 = vshrl.u32 %v2263, 7
        %v2265 = vsub.s32 %v2262, %v2264
        %v2266 = vrot.slane %v2250, %v2265
        %v2268 = vunpack.c.l.s4 1966171168
        %v2269 = vunpack.c.0.s8 %v2268
        %v2270 = vlaneseq
        %v2271 = vshrl.u32 %v2270, 7
        %v2272 = vsub.s32 %v2269, %v2271
        %v2273 = vrot.slane %v2251, %v2272
        %v2275 = vunpack.c.l.s4 1966171168
        %v2276 = vunpack.c.0.s8 %v2275
        %v2277 = vlaneseq
        %v2278 = vshrl.u32 %v2277, 7
        %v2279 = vsub.s32 %v2276, %v2278
        %v2280 = vrot.slane %v2252, %v2279
        %v2281 = vcombine.low %v2259, %v2266
        %v2282 = vcombine.low %v2273, %v2280
        %v2284 = vunpack.c.l.s4 1966171168
        %v2285 = vunpack.c.0.s8 %v2284
        %v2286 = vlaneseq
        %v2287 = vshrl.u32 %v2286, 7
        %v2288 = vsub.s32 %v2285, %v2287
        %v2289 = vrot.slane %v2281, %v2288
        %v2291 = vunpack.c.l.s4 1966171168
        %v2292 = vunpack.c.0.s8 %v2291
        %v2293 = vlaneseq
        %v2294 = vshrl.u32 %v2293, 7
        %v2295 = vsub.s32 %v2292, %v2294
        %v2296 = vrot.slane %v2282, %v2295
        %v2297 = vcombine.low %v2289, %v2296
        %v2298 = vcombine.low %v971, %v975
        %v2299 = vcombine.low %v979, %v983
        %v2300 = vcombine.low %v987, %v991
        %v2301 = vcombine.low %v995, %v999
        %v2303 = vunpack.c.l.s4 1966171168
        %v2304 = vunpack.c.0.s8 %v2303
        %v2305 = vlaneseq
        %v2306 = vshrl.u32 %v2305, 7
        %v2307 = vsub.s32 %v2304, %v2306
        %v2308 = vrot.slane %v2298, %v2307
        %v2310 = vunpack.c.l.s4 1966171168
        %v2311 = vunpack.c.0.s8 %v2310
        %v2312 = vlaneseq
        %v2313 = vshrl.u32 %v2312, 7
        %v2314 = vsub.s32 %v2311, %v2313
        %v2315 = vrot.slane %v2299, %v2314
        %v2317 = vunpack.c.l.s4 1966171168
        %v2318 = vunpack.c.0.s8 %v2317
        %v2319 = vlaneseq
        %v2320 = vshrl.u32 %v2319, 7
        %v2321 = vsub.s32 %v2318, %v2320
        %v2322 = vrot.slane %v2300, %v2321
        %v2324 = vunpack.c.l.s4 1966171168
        %v2325 = vunpack.c.0.s8 %v2324
        %v2326 = vlaneseq
        %v2327 = vshrl.u32 %v2326, 7
        %v2328 = vsub.s32 %v2325, %v2327
        %v2329 = vrot.slane %v2301, %v2328
        %v2330 = vcombine.low %v2308, %v2315
        %v2331 = vcombine.low %v2322, %v2329
        %v2333 = vunpack.c.l.s4 1966171168
        %v2334 = vunpack.c.0.s8 %v2333
        %v2335 = vlaneseq
        %v2336 = vshrl.u32 %v2335, 7
        %v2337 = vsub.s32 %v2334, %v2336
        %v2338 = vrot.slane %v2330, %v2337
        %v2340 = vunpack.c.l.s4 1966171168
        %v2341 = vunpack.c.0.s8 %v2340
        %v2342 = vlaneseq
        %v2343 = vshrl.u32 %v2342, 7
        %v2344 = vsub.s32 %v2341, %v2343
        %v2345 = vrot.slane %v2331, %v2344
        %v2346 = vcombine.low %v2338, %v2345
        %v2347 = vcombine.low %v1003, %v1007
        %v2348 = vcombine.low %v1011, %v1015
        %v2349 = vcombine.low %v1019, %v1023
        %v2350 = vcombine.low %v1027, %v1031
        %v2352 = vunpack.c.l.s4 1966171168
        %v2353 = vunpack.c.0.s8 %v2352
        %v2354 = vlaneseq
        %v2355 = vshrl.u32 %v2354, 7
        %v2356 = vsub.s32 %v2353, %v2355
        %v2357 = vrot.slane %v2347, %v2356
        %v2359 = vunpack.c.l.s4 1966171168
        %v2360 = vunpack.c.0.s8 %v2359
        %v2361 = vlaneseq
        %v2362 = vshrl.u32 %v2361, 7
        %v2363 = vsub.s32 %v2360, %v2362
        %v2364 = vrot.slane %v2348, %v2363
        %v2366 = vunpack.c.l.s4 1966171168
        %v2367 = vunpack.c.0.s8 %v2366
        %v2368 = vlaneseq
        %v2369 = vshrl.u32 %v2368, 7
        %v2370 = vsub.s32 %v2367, %v2369
        %v2371 = vrot.slane %v2349, %v2370
        %v2373 = vunpack.c.l.s4 1966171168
        %v2374 = vunpack.c.0.s8 %v2373
        %v2375 = vlaneseq
        %v2376 = vshrl.u32 %v2375, 7
        %v2377 = vsub.s32 %v2374, %v2376
        %v2378 = vrot.slane %v2350, %v2377
        %v2379 = vcombine.low %v2357, %v2364
        %v2380 = vcombine.low %v2371, %v2378
        %v2382 = vunpack.c.l.s4 1966171168
        %v2383 = vunpack.c.0.s8 %v2382
        %v2384 = vlaneseq
        %v2385 = vshrl.u32 %v2384, 7
        %v2386 = vsub.s32 %v2383, %v2385
        %v2387 = vrot.slane %v2379, %v2386
        %v2389 = vunpack.c.l.s4 1966171168
        %v2390 = vunpack.c.0.s8 %v2389
        %v2391 = vlaneseq
        %v2392 = vshrl.u32 %v2391, 7
        %v2393 = vsub.s32 %v2390, %v2392
        %v2394 = vrot.slane %v2380, %v2393
        %v2395 = vcombine.low %v2387, %v2394
        %v2396 = vcombine.low %v1035, %v1039
        %v2397 = vcombine.low %v1043, %v1047
        %v2398 = vcombine.low %v1051, %v1055
        %v2399 = vcombine.low %v1059, %v1063
        %v2401 = vunpack.c.l.s4 1966171168
        %v2402 = vunpack.c.0.s8 %v2401
        %v2403 = vlaneseq
        %v2404 = vshrl.u32 %v2403, 7
        %v2405 = vsub.s32 %v2402, %v2404
        %v2406 = vrot.slane %v2396, %v2405
        %v2408 = vunpack.c.l.s4 1966171168
        %v2409 = vunpack.c.0.s8 %v2408
        %v2410 = vlaneseq
        %v2411 = vshrl.u32 %v2410, 7
        %v2412 = vsub.s32 %v2409, %v2411
        %v2413 = vrot.slane %v2397, %v2412
        %v2415 = vunpack.c.l.s4 1966171168
        %v2416 = vunpack.c.0.s8 %v2415
        %v2417 = vlaneseq
        %v2418 = vshrl.u32 %v2417, 7
        %v2419 = vsub.s32 %v2416, %v2418
        %v2420 = vrot.slane %v2398, %v2419
        %v2422 = vunpack.c.l.s4 1966171168
        %v2423 = vunpack.c.0.s8 %v2422
        %v2424 = vlaneseq
        %v2425 = vshrl.u32 %v2424, 7
        %v2426 = vsub.s32 %v2423, %v2425
        %v2427 = vrot.slane %v2399, %v2426
        %v2428 = vcombine.low %v2406, %v2413
        %v2429 = vcombine.low %v2420, %v2427
        %v2431 = vunpack.c.l.s4 1966171168
        %v2432 = vunpack.c.0.s8 %v2431
        %v2433 = vlaneseq
        %v2434 = vshrl.u32 %v2433, 7
        %v2435 = vsub.s32 %v2432, %v2434
        %v2436 = vrot.slane %v2428, %v2435
        %v2438 = vunpack.c.l.s4 1966171168
        %v2439 = vunpack.c.0.s8 %v2438
        %v2440 = vlaneseq
        %v2441 = vshrl.u32 %v2440, 7
        %v2442 = vsub.s32 %v2439, %v2441
        %v2443 = vrot.slane %v2429, %v2442
        %v2444 = vcombine.low %v2436, %v2443
        %v2445 = vcombine.low %v1067, %v1071
        %v2446 = vcombine.low %v1075, %v1079
        %v2447 = vcombine.low %v1083, %v1087
        %v2448 = vcombine.low %v1091, %v1095
        %v2450 = vunpack.c.l.s4 1966171168
        %v2451 = vunpack.c.0.s8 %v2450
        %v2452 = vlaneseq
        %v2453 = vshrl.u32 %v2452, 7
        %v2454 = vsub.s32 %v2451, %v2453
        %v2455 = vrot.slane %v2445, %v2454
        %v2457 = vunpack.c.l.s4 1966171168
        %v2458 = vunpack.c.0.s8 %v2457
        %v2459 = vlaneseq
        %v2460 = vshrl.u32 %v2459, 7
        %v2461 = vsub.s32 %v2458, %v2460
        %v2462 = vrot.slane %v2446, %v2461
        %v2464 = vunpack.c.l.s4 1966171168
        %v2465 = vunpack.c.0.s8 %v2464
        %v2466 = vlaneseq
        %v2467 = vshrl.u32 %v2466, 7
        %v2468 = vsub.s32 %v2465, %v2467
        %v2469 = vrot.slane %v2447, %v2468
        %v2471 = vunpack.c.l.s4 1966171168
        %v2472 = vunpack.c.0.s8 %v2471
        %v2473 = vlaneseq
        %v2474 = vshrl.u32 %v2473, 7
        %v2475 = vsub.s32 %v2472, %v2474
        %v2476 = vrot.slane %v2448, %v2475
        %v2477 = vcombine.low %v2455, %v2462
        %v2478 = vcombine.low %v2469, %v2476
        %v2480 = vunpack.c.l.s4 1966171168
        %v2481 = vunpack.c.0.s8 %v2480
        %v2482 = vlaneseq
        %v2483 = vshrl.u32 %v2482, 7
        %v2484 = vsub.s32 %v2481, %v2483
        %v2485 = vrot.slane %v2477, %v2484
        %v2487 = vunpack.c.l.s4 1966171168
        %v2488 = vunpack.c.0.s8 %v2487
        %v2489 = vlaneseq
        %v2490 = vshrl.u32 %v2489, 7
        %v2491 = vsub.s32 %v2488, %v2490
        %v2492 = vrot.slane %v2478, %v2491
        %v2493 = vcombine.low %v2485, %v2492
        %v2494 = vcombine.low %v1099, %v1103
        %v2495 = vcombine.low %v1107, %v1111
        %v2496 = vcombine.low %v1115, %v1119
        %v2497 = vcombine.low %v1123, %v1127
        %v2499 = vunpack.c.l.s4 1966171168
        %v2500 = vunpack.c.0.s8 %v2499
        %v2501 = vlaneseq
        %v2502 = vshrl.u32 %v2501, 7
        %v2503 = vsub.s32 %v2500, %v2502
        %v2504 = vrot.slane %v2494, %v2503
        %v2506 = vunpack.c.l.s4 1966171168
        %v2507 = vunpack.c.0.s8 %v2506
        %v2508 = vlaneseq
        %v2509 = vshrl.u32 %v2508, 7
        %v2510 = vsub.s32 %v2507, %v2509
        %v2511 = vrot.slane %v2495, %v2510
        %v2513 = vunpack.c.l.s4 1966171168
        %v2514 = vunpack.c.0.s8 %v2513
        %v2515 = vlaneseq
        %v2516 = vshrl.u32 %v2515, 7
        %v2517 = vsub.s32 %v2514, %v2516
        %v2518 = vrot.slane %v2496, %v2517
        %v2520 = vunpack.c.l.s4 1966171168
        %v2521 = vunpack.c.0.s8 %v2520
        %v2522 = vlaneseq
        %v2523 = vshrl.u32 %v2522, 7
        %v2524 = vsub.s32 %v2521, %v2523
        %v2525 = vrot.slane %v2497, %v2524
        %v2526 = vcombine.low %v2504, %v2511
        %v2527 = vcombine.low %v2518, %v2525
        %v2529 = vunpack.c.l.s4 1966171168
        %v2530 = vunpack.c.0.s8 %v2529
        %v2531 = vlaneseq
        %v2532 = vshrl.u32 %v2531, 7
        %v2533 = vsub.s32 %v2530, %v2532
        %v2534 = vrot.slane %v2526, %v2533
        %v2536 = vunpack.c.l.s4 1966171168
        %v2537 = vunpack.c.0.s8 %v2536
        %v2538 = vlaneseq
        %v2539 = vshrl.u32 %v2538, 7
        %v2540 = vsub.s32 %v2537, %v2539
        %v2541 = vrot.slane %v2527, %v2540
        %v2542 = vcombine.low %v2534, %v2541
        %v2543 = vcombine.low %v1131, %v1135
        %v2544 = vcombine.low %v1139, %v1143
        %v2545 = vcombine.low %v1147, %v1151
        %v2546 = vcombine.low %v1155, %v1159
        %v2548 = vunpack.c.l.s4 1966171168
        %v2549 = vunpack.c.0.s8 %v2548
        %v2550 = vlaneseq
        %v2551 = vshrl.u32 %v2550, 7
        %v2552 = vsub.s32 %v2549, %v2551
        %v2553 = vrot.slane %v2543, %v2552
        %v2555 = vunpack.c.l.s4 1966171168
        %v2556 = vunpack.c.0.s8 %v2555
        %v2557 = vlaneseq
        %v2558 = vshrl.u32 %v2557, 7
        %v2559 = vsub.s32 %v2556, %v2558
        %v2560 = vrot.slane %v2544, %v2559
        %v2562 = vunpack.c.l.s4 1966171168
        %v2563 = vunpack.c.0.s8 %v2562
        %v2564 = vlaneseq
        %v2565 = vshrl.u32 %v2564, 7
        %v2566 = vsub.s32 %v2563, %v2565
        %v2567 = vrot.slane %v2545, %v2566
        %v2569 = vunpack.c.l.s4 1966171168
        %v2570 = vunpack.c.0.s8 %v2569
        %v2571 = vlaneseq
        %v2572 = vshrl.u32 %v2571, 7
        %v2573 = vsub.s32 %v2570, %v2572
        %v2574 = vrot.slane %v2546, %v2573
        %v2575 = vcombine.low %v2553, %v2560
        %v2576 = vcombine.low %v2567, %v2574
        %v2578 = vunpack.c.l.s4 1966171168
        %v2579 = vunpack.c.0.s8 %v2578
        %v2580 = vlaneseq
        %v2581 = vshrl.u32 %v2580, 7
        %v2582 = vsub.s32 %v2579, %v2581
        %v2583 = vrot.slane %v2575, %v2582
        %v2585 = vunpack.c.l.s4 1966171168
        %v2586 = vunpack.c.0.s8 %v2585
        %v2587 = vlaneseq
        %v2588 = vshrl.u32 %v2587, 7
        %v2589 = vsub.s32 %v2586, %v2588
        %v2590 = vrot.slane %v2576, %v2589
        %v2591 = vcombine.low %v2583, %v2590
        %v2592 = vcombine.low %v1163, %v1167
        %v2593 = vcombine.low %v1171, %v1175
        %v2594 = vcombine.low %v1179, %v1183
        %v2595 = vcombine.low %v1187, %v1191
        %v2597 = vunpack.c.l.s4 1966171168
        %v2598 = vunpack.c.0.s8 %v2597
        %v2599 = vlaneseq
        %v2600 = vshrl.u32 %v2599, 7
        %v2601 = vsub.s32 %v2598, %v2600
        %v2602 = vrot.slane %v2592, %v2601
        %v2604 = vunpack.c.l.s4 1966171168
        %v2605 = vunpack.c.0.s8 %v2604
        %v2606 = vlaneseq
        %v2607 = vshrl.u32 %v2606, 7
        %v2608 = vsub.s32 %v2605, %v2607
        %v2609 = vrot.slane %v2593, %v2608
        %v2611 = vunpack.c.l.s4 1966171168
        %v2612 = vunpack.c.0.s8 %v2611
        %v2613 = vlaneseq
        %v2614 = vshrl.u32 %v2613, 7
        %v2615 = vsub.s32 %v2612, %v2614
        %v2616 = vrot.slane %v2594, %v2615
        %v2618 = vunpack.c.l.s4 1966171168
        %v2619 = vunpack.c.0.s8 %v2618
        %v2620 = vlaneseq
        %v2621 = vshrl.u32 %v2620, 7
        %v2622 = vsub.s32 %v2619, %v2621
        %v2623 = vrot.slane %v2595, %v2622
        %v2624 = vcombine.low %v2602, %v2609
        %v2625 = vcombine.low %v2616, %v2623
        %v2627 = vunpack.c.l.s4 1966171168
        %v2628 = vunpack.c.0.s8 %v2627
        %v2629 = vlaneseq
        %v2630 = vshrl.u32 %v2629, 7
        %v2631 = vsub.s32 %v2628, %v2630
        %v2632 = vrot.slane %v2624, %v2631
        %v2634 = vunpack.c.l.s4 1966171168
        %v2635 = vunpack.c.0.s8 %v2634
        %v2636 = vlaneseq
        %v2637 = vshrl.u32 %v2636, 7
        %v2638 = vsub.s32 %v2635, %v2637
        %v2639 = vrot.slane %v2625, %v2638
        %v2640 = vcombine.low %v2632, %v2639
        %v2641 = vcombine.low %v1195, %v1199
        %v2642 = vcombine.low %v1203, %v1207
        %v2643 = vcombine.low %v1211, %v1215
        %v2644 = vcombine.low %v1219, %v1223
        %v2646 = vunpack.c.l.s4 1966171168
        %v2647 = vunpack.c.0.s8 %v2646
        %v2648 = vlaneseq
        %v2649 = vshrl.u32 %v2648, 7
        %v2650 = vsub.s32 %v2647, %v2649
        %v2651 = vrot.slane %v2641, %v2650
        %v2653 = vunpack.c.l.s4 1966171168
        %v2654 = vunpack.c.0.s8 %v2653
        %v2655 = vlaneseq
        %v2656 = vshrl.u32 %v2655, 7
        %v2657 = vsub.s32 %v2654, %v2656
        %v2658 = vrot.slane %v2642, %v2657
        %v2660 = vunpack.c.l.s4 1966171168
        %v2661 = vunpack.c.0.s8 %v2660
        %v2662 = vlaneseq
        %v2663 = vshrl.u32 %v2662, 7
        %v2664 = vsub.s32 %v2661, %v2663
        %v2665 = vrot.slane %v2643, %v2664
        %v2667 = vunpack.c.l.s4 1966171168
        %v2668 = vunpack.c.0.s8 %v2667
        %v2669 = vlaneseq
        %v2670 = vshrl.u32 %v2669, 7
        %v2671 = vsub.s32 %v2668, %v2670
        %v2672 = vrot.slane %v2644, %v2671
        %v2673 = vcombine.low %v2651, %v2658
        %v2674 = vcombine.low %v2665, %v2672
        %v2676 = vunpack.c.l.s4 1966171168
        %v2677 = vunpack.c.0.s8 %v2676
        %v2678 = vlaneseq
        %v2679 = vshrl.u32 %v2678, 7
        %v2680 = vsub.s32 %v2677, %v2679
        %v2681 = vrot.slane %v2673, %v2680
        %v2683 = vunpack.c.l.s4 1966171168
        %v2684 = vunpack.c.0.s8 %v2683
        %v2685 = vlaneseq
        %v2686 = vshrl.u32 %v2685, 7
        %v2687 = vsub.s32 %v2684, %v2686
        %v2688 = vrot.slane %v2674, %v2687
        %v2689 = vcombine.low %v2681, %v2688
        %v2690 = vcombine.low %v1227, %v1231
        %v2691 = vcombine.low %v1235, %v1239
        %v2692 = vcombine.low %v1243, %v1247
        %v2693 = vcombine.low %v1251, %v1255
        %v2695 = vunpack.c.l.s4 1966171168
        %v2696 = vunpack.c.0.s8 %v2695
        %v2697 = vlaneseq
        %v2698 = vshrl.u32 %v2697, 7
        %v2699 = vsub.s32 %v2696, %v2698
        %v2700 = vrot.slane %v2690, %v2699
        %v2702 = vunpack.c.l.s4 1966171168
        %v2703 = vunpack.c.0.s8 %v2702
        %v2704 = vlaneseq
        %v2705 = vshrl.u32 %v2704, 7
        %v2706 = vsub.s32 %v2703, %v2705
        %v2707 = vrot.slane %v2691, %v2706
        %v2709 = vunpack.c.l.s4 1966171168
        %v2710 = vunpack.c.0.s8 %v2709
        %v2711 = vlaneseq
        %v2712 = vshrl.u32 %v2711, 7
        %v2713 = vsub.s32 %v2710, %v2712
        %v2714 = vrot.slane %v2692, %v2713
        %v2716 = vunpack.c.l.s4 1966171168
        %v2717 = vunpack.c.0.s8 %v2716
        %v2718 = vlaneseq
        %v2719 = vshrl.u32 %v2718, 7
        %v2720 = vsub.s32 %v2717, %v2719
        %v2721 = vrot.slane %v2693, %v2720
        %v2722 = vcombine.low %v2700, %v2707
        %v2723 = vcombine.low %v2714, %v2721
        %v2725 = vunpack.c.l.s4 1966171168
        %v2726 = vunpack.c.0.s8 %v2725
        %v2727 = vlaneseq
        %v2728 = vshrl.u32 %v2727, 7
        %v2729 = vsub.s32 %v2726, %v2728
        %v2730 = vrot.slane %v2722, %v2729
        %v2732 = vunpack.c.l.s4 1966171168
        %v2733 = vunpack.c.0.s8 %v2732
        %v2734 = vlaneseq
        %v2735 = vshrl.u32 %v2734, 7
        %v2736 = vsub.s32 %v2733, %v2735
        %v2737 = vrot.slane %v2723, %v2736
        %v2738 = vcombine.low %v2730, %v2737
        %v2739 = vcombine.low %v1259, %v1263
        %v2740 = vcombine.low %v1267, %v1271
        %v2741 = vcombine.low %v1275, %v1279
        %v2742 = vcombine.low %v1283, %v1287
        %v2744 = vunpack.c.l.s4 1966171168
        %v2745 = vunpack.c.0.s8 %v2744
        %v2746 = vlaneseq
        %v2747 = vshrl.u32 %v2746, 7
        %v2748 = vsub.s32 %v2745, %v2747
        %v2749 = vrot.slane %v2739, %v2748
        %v2751 = vunpack.c.l.s4 1966171168
        %v2752 = vunpack.c.0.s8 %v2751
        %v2753 = vlaneseq
        %v2754 = vshrl.u32 %v2753, 7
        %v2755 = vsub.s32 %v2752, %v2754
        %v2756 = vrot.slane %v2740, %v2755
        %v2758 = vunpack.c.l.s4 1966171168
        %v2759 = vunpack.c.0.s8 %v2758
        %v2760 = vlaneseq
        %v2761 = vshrl.u32 %v2760, 7
        %v2762 = vsub.s32 %v2759, %v2761
        %v2763 = vrot.slane %v2741, %v2762
        %v2765 = vunpack.c.l.s4 1966171168
        %v2766 = vunpack.c.0.s8 %v2765
        %v2767 = vlaneseq
        %v2768 = vshrl.u32 %v2767, 7
        %v2769 = vsub.s32 %v2766, %v2768
        %v2770 = vrot.slane %v2742, %v2769
        %v2771 = vcombine.low %v2749, %v2756
        %v2772 = vcombine.low %v2763, %v2770
        %v2774 = vunpack.c.l.s4 1966171168
        %v2775 = vunpack.c.0.s8 %v2774
        %v2776 = vlaneseq
        %v2777 = vshrl.u32 %v2776, 7
        %v2778 = vsub.s32 %v2775, %v2777
        %v2779 = vrot.slane %v2771, %v2778
        %v2781 = vunpack.c.l.s4 1966171168
        %v2782 = vunpack.c.0.s8 %v2781
        %v2783 = vlaneseq
        %v2784 = vshrl.u32 %v2783, 7
        %v2785 = vsub.s32 %v2782, %v2784
        %v2786 = vrot.slane %v2772, %v2785
        %v2787 = vcombine.low %v2779, %v2786
        %v2788 = vcombine.low %v1291, %v1295
        %v2789 = vcombine.low %v1299, %v1303
        %v2790 = vcombine.low %v1307, %v1311
        %v2791 = vcombine.low %v1315, %v1319
        %v2793 = vunpack.c.l.s4 1966171168
        %v2794 = vunpack.c.0.s8 %v2793
        %v2795 = vlaneseq
        %v2796 = vshrl.u32 %v2795, 7
        %v2797 = vsub.s32 %v2794, %v2796
        %v2798 = vrot.slane %v2788, %v2797
        %v2800 = vunpack.c.l.s4 1966171168
        %v2801 = vunpack.c.0.s8 %v2800
        %v2802 = vlaneseq
        %v2803 = vshrl.u32 %v2802, 7
        %v2804 = vsub.s32 %v2801, %v2803
        %v2805 = vrot.slane %v2789, %v2804
        %v2807 = vunpack.c.l.s4 1966171168
        %v2808 = vunpack.c.0.s8 %v2807
        %v2809 = vlaneseq
        %v2810 = vshrl.u32 %v2809, 7
        %v2811 = vsub.s32 %v2808, %v2810
        %v2812 = vrot.slane %v2790, %v2811
        %v2814 = vunpack.c.l.s4 1966171168
        %v2815 = vunpack.c.0.s8 %v2814
        %v2816 = vlaneseq
        %v2817 = vshrl.u32 %v2816, 7
        %v2818 = vsub.s32 %v2815, %v2817
        %v2819 = vrot.slane %v2791, %v2818
        %v2820 = vcombine.low %v2798, %v2805
        %v2821 = vcombine.low %v2812, %v2819
        %v2823 = vunpack.c.l.s4 1966171168
        %v2824 = vunpack.c.0.s8 %v2823
        %v2825 = vlaneseq
        %v2826 = vshrl.u32 %v2825, 7
        %v2827 = vsub.s32 %v2824, %v2826
        %v2828 = vrot.slane %v2820, %v2827
        %v2830 = vunpack.c.l.s4 1966171168
        %v2831 = vunpack.c.0.s8 %v2830
        %v2832 = vlaneseq
        %v2833 = vshrl.u32 %v2832, 7
        %v2834 = vsub.s32 %v2831, %v2833
        %v2835 = vrot.slane %v2821, %v2834
        %v2836 = vcombine.low %v2828, %v2835
        %v2837 = vcombine.low %v1323, %v1327
        %v2838 = vcombine.low %v1331, %v1335
        %v2839 = vcombine.low %v1339, %v1343
        %v2840 = vcombine.low %v1347, %v1351
        %v2842 = vunpack.c.l.s4 1966171168
        %v2843 = vunpack.c.0.s8 %v2842
        %v2844 = vlaneseq
        %v2845 = vshrl.u32 %v2844, 7
        %v2846 = vsub.s32 %v2843, %v2845
        %v2847 = vrot.slane %v2837, %v2846
        %v2849 = vunpack.c.l.s4 1966171168
        %v2850 = vunpack.c.0.s8 %v2849
        %v2851 = vlaneseq
        %v2852 = vshrl.u32 %v2851, 7
        %v2853 = vsub.s32 %v2850, %v2852
        %v2854 = vrot.slane %v2838, %v2853
        %v2856 = vunpack.c.l.s4 1966171168
        %v2857 = vunpack.c.0.s8 %v2856
        %v2858 = vlaneseq
        %v2859 = vshrl.u32 %v2858, 7
        %v2860 = vsub.s32 %v2857, %v2859
        %v2861 = vrot.slane %v2839, %v2860
        %v2863 = vunpack.c.l.s4 1966171168
        %v2864 = vunpack.c.0.s8 %v2863
        %v2865 = vlaneseq
        %v2866 = vshrl.u32 %v2865, 7
        %v2867 = vsub.s32 %v2864, %v2866
        %v2868 = vrot.slane %v2840, %v2867
        %v2869 = vcombine.low %v2847, %v2854
        %v2870 = vcombine.low %v2861, %v2868
        %v2872 = vunpack.c.l.s4 1966171168
        %v2873 = vunpack.c.0.s8 %v2872
        %v2874 = vlaneseq
        %v2875 = vshrl.u32 %v2874, 7
        %v2876 = vsub.s32 %v2873, %v2875
        %v2877 = vrot.slane %v2869, %v2876
        %v2879 = vunpack.c.l.s4 1966171168
        %v2880 = vunpack.c.0.s8 %v2879
        %v2881 = vlaneseq
        %v2882 = vshrl.u32 %v2881, 7
        %v2883 = vsub.s32 %v2880, %v2882
        %v2884 = vrot.slane %v2870, %v2883
        %v2885 = vcombine.low %v2877, %v2884
        %v2886 = vcombine.low %v1355, %v1359
        %v2887 = vcombine.low %v1363, %v1367
        %v2888 = vcombine.low %v1371, %v1375
        %v2889 = vcombine.low %v1379, %v1383
        %v2891 = vunpack.c.l.s4 1966171168
        %v2892 = vunpack.c.0.s8 %v2891
        %v2893 = vlaneseq
        %v2894 = vshrl.u32 %v2893, 7
        %v2895 = vsub.s32 %v2892, %v2894
        %v2896 = vrot.slane %v2886, %v2895
        %v2898 = vunpack.c.l.s4 1966171168
        %v2899 = vunpack.c.0.s8 %v2898
        %v2900 = vlaneseq
        %v2901 = vshrl.u32 %v2900, 7
        %v2902 = vsub.s32 %v2899, %v2901
        %v2903 = vrot.slane %v2887, %v2902
        %v2905 = vunpack.c.l.s4 1966171168
        %v2906 = vunpack.c.0.s8 %v2905
        %v2907 = vlaneseq
        %v2908 = vshrl.u32 %v2907, 7
        %v2909 = vsub.s32 %v2906, %v2908
        %v2910 = vrot.slane %v2888, %v2909
        %v2912 = vunpack.c.l.s4 1966171168
        %v2913 = vunpack.c.0.s8 %v2912
        %v2914 = vlaneseq
        %v2915 = vshrl.u32 %v2914, 7
        %v2916 = vsub.s32 %v2913, %v2915
        %v2917 = vrot.slane %v2889, %v2916
        %v2918 = vcombine.low %v2896, %v2903
        %v2919 = vcombine.low %v2910, %v2917
        %v2921 = vunpack.c.l.s4 1966171168
        %v2922 = vunpack.c.0.s8 %v2921
        %v2923 = vlaneseq
        %v2924 = vshrl.u32 %v2923, 7
        %v2925 = vsub.s32 %v2922, %v2924
        %v2926 = vrot.slane %v2918, %v2925
        %v2928 = vunpack.c.l.s4 1966171168
        %v2929 = vunpack.c.0.s8 %v2928
        %v2930 = vlaneseq
        %v2931 = vshrl.u32 %v2930, 7
        %v2932 = vsub.s32 %v2929, %v2931
        %v2933 = vrot.slane %v2919, %v2932
        %v2934 = vcombine.low %v2926, %v2933
        %v2935 = vcombine.low %v1387, %v1391
        %v2936 = vcombine.low %v1395, %v1399
        %v2937 = vcombine.low %v1403, %v1407
        %v2938 = vcombine.low %v1411, %v1415
        %v2940 = vunpack.c.l.s4 1966171168
        %v2941 = vunpack.c.0.s8 %v2940
        %v2942 = vlaneseq
        %v2943 = vshrl.u32 %v2942, 7
        %v2944 = vsub.s32 %v2941, %v2943
        %v2945 = vrot.slane %v2935, %v2944
        %v2947 = vunpack.c.l.s4 1966171168
        %v2948 = vunpack.c.0.s8 %v2947
        %v2949 = vlaneseq
        %v2950 = vshrl.u32 %v2949, 7
        %v2951 = vsub.s32 %v2948, %v2950
        %v2952 = vrot.slane %v2936, %v2951
        %v2954 = vunpack.c.l.s4 1966171168
        %v2955 = vunpack.c.0.s8 %v2954
        %v2956 = vlaneseq
        %v2957 = vshrl.u32 %v2956, 7
        %v2958 = vsub.s32 %v2955, %v2957
        %v2959 = vrot.slane %v2937, %v2958
        %v2961 = vunpack.c.l.s4 1966171168
        %v2962 = vunpack.c.0.s8 %v2961
        %v2963 = vlaneseq
        %v2964 = vshrl.u32 %v2963, 7
        %v2965 = vsub.s32 %v2962, %v2964
        %v2966 = vrot.slane %v2938, %v2965
        %v2967 = vcombine.low %v2945, %v2952
        %v2968 = vcombine.low %v2959, %v2966
        %v2970 = vunpack.c.l.s4 1966171168
        %v2971 = vunpack.c.0.s8 %v2970
        %v2972 = vlaneseq
        %v2973 = vshrl.u32 %v2972, 7
        %v2974 = vsub.s32 %v2971, %v2973
        %v2975 = vrot.slane %v2967, %v2974
        %v2977 = vunpack.c.l.s4 1966171168
        %v2978 = vunpack.c.0.s8 %v2977
        %v2979 = vlaneseq
        %v2980 = vshrl.u32 %v2979, 7
        %v2981 = vsub.s32 %v2978, %v2980
        %v2982 = vrot.slane %v2968, %v2981
        %v2983 = vcombine.low %v2975, %v2982
        %2984 = vset.pattern.permute.xlu0 0
        %2985 = vperm.xlu0 %2984, %v1464
        %v2986 = vpop.permute.xlu0 %2985
        %2987 = vset.pattern.permute.xlu0 0
        %2988 = vperm.xlu0 %2987, %v1513
        %v2989 = vpop.permute.xlu0 %2988
        %2990 = vset.pattern.permute.xlu0 0
        %2991 = vperm.xlu0 %2990, %v1562
        %v2992 = vpop.permute.xlu0 %2991
        %2993 = vset.pattern.permute.xlu0 0
        %2994 = vperm.xlu0 %2993, %v1611
        %v2995 = vpop.permute.xlu0 %2994
        %2996 = vset.pattern.permute.xlu0 0
        %2997 = vperm.xlu0 %2996, %v1660
        %v2998 = vpop.permute.xlu0 %2997
        %2999 = vset.pattern.permute.xlu0 0
        %3000 = vperm.xlu0 %2999, %v1709
        %v3001 = vpop.permute.xlu0 %3000
        %3002 = vset.pattern.permute.xlu0 0
        %3003 = vperm.xlu0 %3002, %v1758
        %v3004 = vpop.permute.xlu0 %3003
        %3005 = vset.pattern.permute.xlu0 0
        %3006 = vperm.xlu0 %3005, %v1807
        %v3007 = vpop.permute.xlu0 %3006
        %3008 = vset.pattern.permute.xlu0 0
        %3009 = vperm.xlu0 %3008, %v1856
        %v3010 = vpop.permute.xlu0 %3009
        %3011 = vset.pattern.permute.xlu0 0
        %3012 = vperm.xlu0 %3011, %v1905
        %v3013 = vpop.permute.xlu0 %3012
        %3014 = vset.pattern.permute.xlu0 0
        %3015 = vperm.xlu0 %3014, %v1954
        %v3016 = vpop.permute.xlu0 %3015
        %3017 = vset.pattern.permute.xlu0 0
        %3018 = vperm.xlu0 %3017, %v2003
        %v3019 = vpop.permute.xlu0 %3018
        %3020 = vset.pattern.permute.xlu0 0
        %3021 = vperm.xlu0 %3020, %v2052
        %v3022 = vpop.permute.xlu0 %3021
        %3023 = vset.pattern.permute.xlu0 0
        %3024 = vperm.xlu0 %3023, %v2101
        %v3025 = vpop.permute.xlu0 %3024
        %3026 = vset.pattern.permute.xlu0 0
        %3027 = vperm.xlu0 %3026, %v2150
        %v3028 = vpop.permute.xlu0 %3027
        %3029 = vset.pattern.permute.xlu0 0
        %3030 = vperm.xlu0 %3029, %v2199
        %v3031 = vpop.permute.xlu0 %3030
        %3032 = vset.pattern.permute.xlu0 0
        %3033 = vperm.xlu0 %3032, %v2248
        %v3034 = vpop.permute.xlu0 %3033
        %3035 = vset.pattern.permute.xlu0 0
        %3036 = vperm.xlu0 %3035, %v2297
        %v3037 = vpop.permute.xlu0 %3036
        %3038 = vset.pattern.permute.xlu0 0
        %3039 = vperm.xlu0 %3038, %v2346
        %v3040 = vpop.permute.xlu0 %3039
        %3041 = vset.pattern.permute.xlu0 0
        %3042 = vperm.xlu0 %3041, %v2395
        %v3043 = vpop.permute.xlu0 %3042
        %3044 = vset.pattern.permute.xlu0 0
        %3045 = vperm.xlu0 %3044, %v2444
        %v3046 = vpop.permute.xlu0 %3045
        %3047 = vset.pattern.permute.xlu0 0
        %3048 = vperm.xlu0 %3047, %v2493
        %v3049 = vpop.permute.xlu0 %3048
        %3050 = vset.pattern.permute.xlu0 0
        %3051 = vperm.xlu0 %3050, %v2542
        %v3052 = vpop.permute.xlu0 %3051
        %3053 = vset.pattern.permute.xlu0 0
        %3054 = vperm.xlu0 %3053, %v2591
        %v3055 = vpop.permute.xlu0 %3054
        %3056 = vset.pattern.permute.xlu0 0
        %3057 = vperm.xlu0 %3056, %v2640
        %v3058 = vpop.permute.xlu0 %3057
        %3059 = vset.pattern.permute.xlu0 0
        %3060 = vperm.xlu0 %3059, %v2689
        %v3061 = vpop.permute.xlu0 %3060
        %3062 = vset.pattern.permute.xlu0 0
        %3063 = vperm.xlu0 %3062, %v2738
        %v3064 = vpop.permute.xlu0 %3063
        %3065 = vset.pattern.permute.xlu0 0
        %3066 = vperm.xlu0 %3065, %v2787
        %v3067 = vpop.permute.xlu0 %3066
        %3068 = vset.pattern.permute.xlu0 0
        %3069 = vperm.xlu0 %3068, %v2836
        %v3070 = vpop.permute.xlu0 %3069
        %3071 = vset.pattern.permute.xlu0 0
        %3072 = vperm.xlu0 %3071, %v2885
        %v3073 = vpop.permute.xlu0 %3072
        %3074 = vset.pattern.permute.xlu0 0
        %3075 = vperm.xlu0 %3074, %v2934
        %v3076 = vpop.permute.xlu0 %3075
        %3077 = vset.pattern.permute.xlu0 0
        %3078 = vperm.xlu0 %3077, %v2983
        %v3079 = vpop.permute.xlu0 %3078
        %v3080 = vlaneseq
        %v3081 = vand.u32 %v3080, 127
        %v3082 = vlaneseq
        %v3083 = vshrl.u32 %v3082, 7
        %v3084 = vsub.s32 %v3081, %v3083
        %v3085 = vrot.slane %v2986, %v3084
        %v3086 = vadd.s32 %v3081, 4294967288
        %v3087 = vlaneseq
        %v3088 = vshrl.u32 %v3087, 7
        %v3089 = vsub.s32 %v3086, %v3088
        %v3090 = vrot.slane %v2989, %v3089
        %vm3091 = vcmask 130112
        %v3092 = vsel %vm3091, %v3090, %v3085
        %v3093 = vadd.s32 %v3081, 4294967280
        %v3094 = vlaneseq
        %v3095 = vshrl.u32 %v3094, 7
        %v3096 = vsub.s32 %v3093, %v3095
        %v3097 = vrot.slane %v2992, %v3096
        %vm3098 = vcmask 195712
        %v3099 = vsel %vm3098, %v3097, %v3092
        %v3100 = vadd.s32 %v3081, 4294967272
        %v3101 = vlaneseq
        %v3102 = vshrl.u32 %v3101, 7
        %v3103 = vsub.s32 %v3100, %v3102
        %v3104 = vrot.slane %v2995, %v3103
        %vm3105 = vcmask 261312
        %v3106 = vsel %vm3105, %v3104, %v3099
        %v3107 = vadd.s32 %v3081, 4294967264
        %v3108 = vlaneseq
        %v3109 = vshrl.u32 %v3108, 7
        %v3110 = vsub.s32 %v3107, %v3109
        %v3111 = vrot.slane %v2998, %v3110
        %vm3112 = vcmask 326912
        %v3113 = vsel %vm3112, %v3111, %v3106
        %v3114 = vadd.s32 %v3081, 4294967256
        %v3115 = vlaneseq
        %v3116 = vshrl.u32 %v3115, 7
        %v3117 = vsub.s32 %v3114, %v3116
        %v3118 = vrot.slane %v3001, %v3117
        %vm3119 = vcmask 392512
        %v3120 = vsel %vm3119, %v3118, %v3113
        %v3121 = vadd.s32 %v3081, 4294967248
        %v3122 = vlaneseq
        %v3123 = vshrl.u32 %v3122, 7
        %v3124 = vsub.s32 %v3121, %v3123
        %v3125 = vrot.slane %v3004, %v3124
        %vm3126 = vcmask 458112
        %v3127 = vsel %vm3126, %v3125, %v3120
        %v3128 = vadd.s32 %v3081, 4294967240
        %v3129 = vlaneseq
        %v3130 = vshrl.u32 %v3129, 7
        %v3131 = vsub.s32 %v3128, %v3130
        %v3132 = vrot.slane %v3007, %v3131
        %vm3133 = vcmask 523712
        %v3134 = vsel %vm3133, %v3132, %v3127
        %v3135 = vadd.s32 %v3081, 4294967232
        %v3136 = vlaneseq
        %v3137 = vshrl.u32 %v3136, 7
        %v3138 = vsub.s32 %v3135, %v3137
        %v3139 = vrot.slane %v3010, %v3138
        %vm3140 = vcmask 589312
        %v3141 = vsel %vm3140, %v3139, %v3134
        %v3142 = vadd.s32 %v3081, 4294967224
        %v3143 = vlaneseq
        %v3144 = vshrl.u32 %v3143, 7
        %v3145 = vsub.s32 %v3142, %v3144
        %v3146 = vrot.slane %v3013, %v3145
        %vm3147 = vcmask 654912
        %v3148 = vsel %vm3147, %v3146, %v3141
        %v3149 = vadd.s32 %v3081, 4294967216
        %v3150 = vlaneseq
        %v3151 = vshrl.u32 %v3150, 7
        %v3152 = vsub.s32 %v3149, %v3151
        %v3153 = vrot.slane %v3016, %v3152
        %vm3154 = vcmask 720512
        %v3155 = vsel %vm3154, %v3153, %v3148
        %v3156 = vadd.s32 %v3081, 4294967208
        %v3157 = vlaneseq
        %v3158 = vshrl.u32 %v3157, 7
        %v3159 = vsub.s32 %v3156, %v3158
        %v3160 = vrot.slane %v3019, %v3159
        %vm3161 = vcmask 786112
        %v3162 = vsel %vm3161, %v3160, %v3155
        %v3163 = vadd.s32 %v3081, 4294967200
        %v3164 = vlaneseq
        %v3165 = vshrl.u32 %v3164, 7
        %v3166 = vsub.s32 %v3163, %v3165
        %v3167 = vrot.slane %v3022, %v3166
        %vm3168 = vcmask 851712
        %v3169 = vsel %vm3168, %v3167, %v3162
        %v3170 = vadd.s32 %v3081, 4294967192
        %v3171 = vlaneseq
        %v3172 = vshrl.u32 %v3171, 7
        %v3173 = vsub.s32 %v3170, %v3172
        %v3174 = vrot.slane %v3025, %v3173
        %vm3175 = vcmask 917312
        %v3176 = vsel %vm3175, %v3174, %v3169
        %v3177 = vadd.s32 %v3081, 4294967184
        %v3178 = vlaneseq
        %v3179 = vshrl.u32 %v3178, 7
        %v3180 = vsub.s32 %v3177, %v3179
        %v3181 = vrot.slane %v3028, %v3180
        %vm3182 = vcmask 982912
        %v3183 = vsel %vm3182, %v3181, %v3176
        %v3184 = vadd.s32 %v3081, 4294967176
        %v3185 = vlaneseq
        %v3186 = vshrl.u32 %v3185, 7
        %v3187 = vsub.s32 %v3184, %v3186
        %v3188 = vrot.slane %v3031, %v3187
        %vm3189 = vcmask 1048512
        %v3190 = vsel %vm3189, %v3188, %v3183
        %v3191 = vlaneseq
        %v3192 = vshrl.u32 %v3191, 7
        %v3193 = vsub.s32 %v3081, %v3192
        %v3194 = vrot.slane %v3034, %v3193
        %v3195 = vlaneseq
        %v3196 = vshrl.u32 %v3195, 7
        %v3197 = vsub.s32 %v3086, %v3196
        %v3198 = vrot.slane %v3037, %v3197
        %v3199 = vsel %vm3091, %v3198, %v3194
        %v3200 = vlaneseq
        %v3201 = vshrl.u32 %v3200, 7
        %v3202 = vsub.s32 %v3093, %v3201
        %v3203 = vrot.slane %v3040, %v3202
        %v3204 = vsel %vm3098, %v3203, %v3199
        %v3205 = vlaneseq
        %v3206 = vshrl.u32 %v3205, 7
        %v3207 = vsub.s32 %v3100, %v3206
        %v3208 = vrot.slane %v3043, %v3207
        %v3209 = vsel %vm3105, %v3208, %v3204
        %v3210 = vlaneseq
        %v3211 = vshrl.u32 %v3210, 7
        %v3212 = vsub.s32 %v3107, %v3211
        %v3213 = vrot.slane %v3046, %v3212
        %v3214 = vsel %vm3112, %v3213, %v3209
        %v3215 = vlaneseq
        %v3216 = vshrl.u32 %v3215, 7
        %v3217 = vsub.s32 %v3114, %v3216
        %v3218 = vrot.slane %v3049, %v3217
        %v3219 = vsel %vm3119, %v3218, %v3214
        %v3220 = vlaneseq
        %v3221 = vshrl.u32 %v3220, 7
        %v3222 = vsub.s32 %v3121, %v3221
        %v3223 = vrot.slane %v3052, %v3222
        %v3224 = vsel %vm3126, %v3223, %v3219
        %v3225 = vlaneseq
        %v3226 = vshrl.u32 %v3225, 7
        %v3227 = vsub.s32 %v3128, %v3226
        %v3228 = vrot.slane %v3055, %v3227
        %v3229 = vsel %vm3133, %v3228, %v3224
        %v3230 = vlaneseq
        %v3231 = vshrl.u32 %v3230, 7
        %v3232 = vsub.s32 %v3135, %v3231
        %v3233 = vrot.slane %v3058, %v3232
        %v3234 = vsel %vm3140, %v3233, %v3229
        %v3235 = vlaneseq
        %v3236 = vshrl.u32 %v3235, 7
        %v3237 = vsub.s32 %v3142, %v3236
        %v3238 = vrot.slane %v3061, %v3237
        %v3239 = vsel %vm3147, %v3238, %v3234
        %v3240 = vlaneseq
        %v3241 = vshrl.u32 %v3240, 7
        %v3242 = vsub.s32 %v3149, %v3241
        %v3243 = vrot.slane %v3064, %v3242
        %v3244 = vsel %vm3154, %v3243, %v3239
        %v3245 = vlaneseq
        %v3246 = vshrl.u32 %v3245, 7
        %v3247 = vsub.s32 %v3156, %v3246
        %v3248 = vrot.slane %v3067, %v3247
        %v3249 = vsel %vm3161, %v3248, %v3244
        %v3250 = vlaneseq
        %v3251 = vshrl.u32 %v3250, 7
        %v3252 = vsub.s32 %v3163, %v3251
        %v3253 = vrot.slane %v3070, %v3252
        %v3254 = vsel %vm3168, %v3253, %v3249
        %v3255 = vlaneseq
        %v3256 = vshrl.u32 %v3255, 7
        %v3257 = vsub.s32 %v3170, %v3256
        %v3258 = vrot.slane %v3073, %v3257
        %v3259 = vsel %vm3175, %v3258, %v3254
        %v3260 = vlaneseq
        %v3261 = vshrl.u32 %v3260, 7
        %v3262 = vsub.s32 %v3177, %v3261
        %v3263 = vrot.slane %v3076, %v3262
        %v3264 = vsel %vm3182, %v3263, %v3259
        %v3265 = vlaneseq
        %v3266 = vshrl.u32 %v3265, 7
        %v3267 = vsub.s32 %v3184, %v3266
        %v3268 = vrot.slane %v3079, %v3267
        %v3269 = vsel %vm3189, %v3268, %v3264
        %v3270 = vcombine.low %v3190, %v3269
        %v3272 = vunpack.c.l.s4 1966171168
        %v3273 = vunpack.c.0.s8 %v3272
        %v3274 = vlaneseq
        %v3275 = vshrl.u32 %v3274, 7
        %v3276 = vsub.s32 %v3273, %v3275
        %v3277 = vrot.slane %v3270, %v3276
        %v3279 = vunpack.c.l.s4 1966171168
        %v3280 = vunpack.c.0.s8 %v3279
        %v3281 = vlaneseq
        %v3282 = vshrl.u32 %v3281, 7
        %v3283 = vsub.s32 %v3280, %v3282
        %v3284 = vrot.slane %v3277, %v3283
        %v3286 = vlaneseq
        %vm3287 = vcmp.ge.s32.totalorder %v3286, 0
        %vm3288 = vcmp.lt.s32.totalorder %v3286, 256
        %vm3289 = vmand %vm3287, %vm3288
        %3290 = vst.msk [vmem:[%s189] sm:$0x3] %vm3289, %v3284
        %s3291 = sand.u32 %s97, 1
        %s3292 = scalar_lea.sflag [#allocation5], %s3291
        %s3293 = sand.u32 %s97, 1
        %s3294 = smul.addr %s3293, 2
        %s3295 = scalar_lea.vmem [#allocation6], %s3294
        // Predicated region
        $region37: #{tpu_custom_call.1} parent=31 // pred_check
          %p3296 = pneg %p107
        $region38: #{tpu_custom_call.1} parent=31 // pred_check_branch
          %3298 = sbr.rel (%p3296) target = $region40
        $region39: #{tpu_custom_call.1} parent=31 // pred_region
          %s3300 = ssub.s32 32, 32
          %3301 = vsyncadd %s3292, %s3300
          %s3302 = smul.addr %s21, 2
          %s3303 = smul.addr %s3302, 16
          %s3304 = scalar_lea.hbm %s3, %s3303
          %s3306 = sshll.u32 %s3295, 4
          %s3307 = int_to_ptr.vmem [resolvable:$true] %s3306
          %3309 = dma.vmem_to_hbm [thread:$0]  %s3307, 32, %s3304, %s3292
        $region40: #{tpu_custom_call.1} parent=31 // pred_fallthru
          _
      $region32: #{tpu_custom_call.1} parent=5 // pred_fallthru
        _
      %p3310 = scmp.le.s32.totalorder 2, %s16
      // Predicated region
      $region41: #{tpu_custom_call.1} parent=5 // pred_check
        %p3311 = pneg %p3310
      $region42: #{tpu_custom_call.1} parent=5 // pred_check_branch
        %3313 = sbr.rel (%p3311) target = $region44
      $region43: #{tpu_custom_call.1} parent=5 // pred_region
        %s3314 = ssub.s32 %s16, 2
        // Predicated region
        $region45: #{tpu_custom_call.1} parent=43 // pred_check
          %p3315 = pneg %p113
        $region46: #{tpu_custom_call.1} parent=43 // pred_check_branch
          %3317 = sbr.rel (%p3315) target = $region48
        $region47: #{tpu_custom_call.1} parent=43 // pred_region
          %s3318 = sand.u32 %s98, 1
          %s3319 = scalar_lea.sflag [#allocation5], %s3318
          %s3320 = sand.u32 %s98, 1
          %s3321 = smul.addr %s3320, 2
          %s3322 = scalar_lea.vmem [#allocation6], %s3321
          %3323 = dma.done %s3319, 32
        $region48: #{tpu_custom_call.1} parent=43 // pred_fallthru
          _
      $region44: #{tpu_custom_call.1} parent=5 // pred_fallthru
        _
    $region6: #{tpu_custom_call.1} parent=1 // loop_footer
      %s20 = sadd.s32 1, %s16
    $region7: #{tpu_custom_call.1} parent=1 // loop_footer_branch
      %15 = sbr.rel target = $region3
    $region8: #{tpu_custom_call.1} parent=1 // loop_exit
      _
    %3324 = vsyncpa [#allocation4], 1
    %s3325 = scalar_lea.sflag [#allocation4], 1
    %3326 = vsyncpa %s3325, 1
    %3327 = vsyncpa [#allocation5], 1
    %s3328 = scalar_lea.sflag [#allocation5], 1
    %3329 = vsyncpa %s3328, 1

// kernel: tpu_custom_call.1
$region0: #{tpu_custom_call.1}
  #allocation0 [shape = 'u32[]', space=smem, size = 0x4, offset = 0x4, fixed_abs, tag = 'smem constant byte address 0x4 - core index']
  #allocation1 [shape = 'u32[144,128]{1,0:T(1,128)}', space=vmem, size = 0x12000, scoped, tag = 'internal scratch']
  #allocation2 [shape = 'f32[1]{0:T(128)S(6)}', space=smem, size = 0x200, scoped, tag = 'scoped memory for tpu_custom_call.1']
  %s0 = inlined_call_operand.vmem [shape: f32[2,32], index: 0, kind: input, shape index: {}]
  %s1 = inlined_call_operand.vmem [shape: f32[1,32], index: 1, kind: input, shape index: {}]
  %s2 = inlined_call_operand.<no memory space> [shape: f32[1], index: 2, kind: input, shape index: {}]
  %s3 = inlined_call_operand.vmem [shape: f32[2,1], index: 3, kind: output, shape index: {}]
  %s4 = sld [smem:[#allocation0]]
  $region22: #{tpu_custom_call.1} parent=0
    _
  %s6 = ssub.s32 1, %s4
  %s7 = scalar_select 0, %s6, %s4
  %8 = sst [smem:[#allocation2]] %s2
  // Predicated region
  $region2: #{tpu_custom_call.1} parent=0 // pred_check
    _
  $region3: #{tpu_custom_call.1} parent=0 // pred_check_branch
    %10 = sbr.rel (0) target = $region5
  $region4: #{tpu_custom_call.1} parent=0 // pred_region
    _
  $region5: #{tpu_custom_call.1} parent=0 // pred_fallthru
    _
  // Predicated region
  $region6: #{tpu_custom_call.1} parent=0 // pred_check
    _
  $region7: #{tpu_custom_call.1} parent=0 // pred_check_branch
    %12 = sbr.rel (0) target = $region9
  $region8: #{tpu_custom_call.1} parent=0 // pred_region
    _
  $region9: #{tpu_custom_call.1} parent=0 // pred_fallthru
    _
  // Predicated region
  $region10: #{tpu_custom_call.1} parent=0 // pred_check
    _
  $region11: #{tpu_custom_call.1} parent=0 // pred_check_branch
    %14 = sbr.rel (0) target = $region13
  $region12: #{tpu_custom_call.1} parent=0 // pred_region
    _
  $region13: #{tpu_custom_call.1} parent=0 // pred_fallthru
    _
  %v15 = vld [vmem:[%s0] sm:$0x3]
  %v16 = vld [vmem:[%s1] sm:$0x1]
  %v18 = vlaneseq
  %v19 = vshrl.u32 %v18, 7
  %v20 = vsub.s32 0, %v19
  %v21 = vrot.slane %v16, %v20
  %v23 = vmul.f32 %v15, %v21
  %vm24 = vcmask 254976
  %v25 = vsel %vm24, %v23, 0.0
  %26 = vadd.xlane.f32.xlu0 %v25
  %v27 = vpop.xlane.xlu0 %26
  %s28 = sld [smem:[#allocation2]]
  %v29 = vstv %s28
  %v30 = vadd.f32 %v27, %v29
  %vm31 = vcmask 1024
  %32 = vst.msk [vmem:[%s3] sm:$0x3] %vm31, %v30
  // Predicated region
  $region14: #{tpu_custom_call.1} parent=0 // pred_check
    _
  $region15: #{tpu_custom_call.1} parent=0 // pred_check_branch
    %34 = sbr.rel (0) target = $region17
  $region16: #{tpu_custom_call.1} parent=0 // pred_region
    _
  $region17: #{tpu_custom_call.1} parent=0 // pred_fallthru
    _
  // Predicated region
  $region18: #{tpu_custom_call.1} parent=0 // pred_check
    _
  $region19: #{tpu_custom_call.1} parent=0 // pred_check_branch
    %36 = sbr.rel (0) target = $region21
  $region20: #{tpu_custom_call.1} parent=0 // pred_region
    _
  $region21: #{tpu_custom_call.1} parent=0 // pred_fallthru
    _

</llo_original>
